<compile_context>
chip_gen: v7x
topology: tpu7x:2x2x1
jax: 0.10.0
libtpu: 0.0.40
codegen_flags: <defaults>
</compile_context>

<pallas_src>
import functools
from collections import OrderedDict

import jax
import jax.numpy as jnp
from jax.experimental import pallas as pl
from jax.experimental.pallas import tpu as pltpu


def _round_up(x, m):
    return ((x + m - 1) // m) * m


def _pick_tile_m(mp, pref=256):
    """Largest M-tile (multiple of 8) that divides mp, capped at `pref`."""
    if mp <= pref:
        return mp
    for t in (pref, 128, 64, 32, 16, 8):
        if mp % t == 0:
            return t
    return 8


_VMEM_LIMIT = 32 * 1024 * 1024  # explicit, safe on v5e/v6e (128 MiB) and v7x (64 MiB)


# ----------------------------------------------------------------------------
# Pallas kernel 1: tiled GEMM + bias + LeakyReLU  (hidden conv layers)
# ----------------------------------------------------------------------------
def _gemm_bias_lrelu_kernel(a_ref, w_ref, b_ref, o_ref, *, negative_slope, apply_act):
    acc = jnp.dot(a_ref[...], w_ref[...], preferred_element_type=jnp.float32)
    acc = acc + b_ref[...]                                   # (tm, Cout) + (1, Cout)
    if apply_act:
        acc = jnp.where(acc >= 0.0, acc, negative_slope * acc)
    o_ref[...] = acc.astype(o_ref.dtype)


def pallas_conv_gemm(cols_bf16, w_f32, b_f32, apply_act, negative_slope=0.2):
    """cols: (M, K) bf16, w: (K, Cout) f32, b: (Cout,) f32 -> (M, Cout) bf16."""
    M, K = cols_bf16.shape
    K2, cout = w_f32.shape
    assert K == K2
    mp = _round_up(M, 8)
    if mp != M:                                    # only when genuinely ragged
        cols_bf16 = jnp.zeros((mp, K), cols_bf16.dtype).at[:M].set(cols_bf16)
    tm = _pick_tile_m(mp)
    grid = (mp // tm,)

    w = w_f32.astype(jnp.bfloat16)
    b = b_f32.reshape(1, cout).astype(jnp.float32)

    cost = pl.CostEstimate(
        flops=2 * mp * K * cout,
        transcendentals=0,
        bytes_accessed=mp * K * 2 + K * cout * 2 + mp * cout * 2,
    )
    out = pl.pallas_call(
        functools.partial(_gemm_bias_lrelu_kernel,
                          negative_slope=negative_slope, apply_act=apply_act),
        grid=grid,
        in_specs=[
            pl.BlockSpec((tm, K), lambda i: (i, 0)),     # A tile (bf16)
            pl.BlockSpec((K, cout), lambda i: (0, 0)),   # W resident (bf16)
            pl.BlockSpec((1, cout), lambda i: (0, 0)),   # bias resident (f32)
        ],
        out_specs=pl.BlockSpec((tm, cout), lambda i: (i, 0)),
        out_shape=jax.ShapeDtypeStruct((mp, cout), jnp.bfloat16),
        compiler_params=pltpu.CompilerParams(
            dimension_semantics=("parallel",),
            vmem_limit_bytes=_VMEM_LIMIT),
        cost_estimate=cost,
    )(cols_bf16, w, b)
    if mp != M:
        out = out[:M]
    return out


# ----------------------------------------------------------------------------
# Pallas kernel 2: final 1-channel conv fused with the hinge-D reduction
# ----------------------------------------------------------------------------
def _final_hinge_kernel(a_ref, w_ref, b_ref, o_ref, *, tm, m_total, n_real,
                        inv_n_real, inv_n_fake):
    i = pl.program_id(0)

    @pl.when(i == 0)
    def _init():
        o_ref[...] = jnp.zeros_like(o_ref)

    # w/b are zero-padded to 128 lanes: lane 0 carries the true patch score.
    scores = jnp.dot(a_ref[...], w_ref[...], preferred_element_type=jnp.float32)
    scores = scores + b_ref[...]                                  # (tm, 128)

    row = jax.lax.broadcasted_iota(jnp.int32, scores.shape, 0) + i * tm
    valid = row < m_total                # mask M-padding rows
    is_real = row < n_real               # rows ordered [real..., fake...]
    hinge = jnp.where(is_real,
                      jnp.maximum(0.0, 1.0 - scores) * inv_n_real,
                      jnp.maximum(0.0, 1.0 + scores) * inv_n_fake)
    hinge = jnp.where(valid, hinge, 0.0)
    # Accumulate per-lane partial sums in the resident (1,128) f32 output block;
    # only lane 0 is meaningful and is extracted by the caller.
    o_ref[...] += jnp.sum(hinge, axis=0, keepdims=True)


def pallas_final_conv_hinge(cols_bf16, w_pad_f32, b_pad_f32, n_real, lam):
    """cols: (M, K) bf16 for the last conv; returns scalar hinge-D loss."""
    M, K = cols_bf16.shape
    n_fake = M - n_real
    mp = _round_up(M, 8)
    if mp != M:
        cols_bf16 = jnp.zeros((mp, K), cols_bf16.dtype).at[:M].set(cols_bf16)
    tm = _pick_tile_m(mp)
    grid = (mp // tm,)

    w = w_pad_f32.astype(jnp.bfloat16)              # (K, 128), cols 1.. are zero
    b = b_pad_f32.reshape(1, 128).astype(jnp.float32)

    cost = pl.CostEstimate(
        flops=2 * mp * K * 128,
        transcendentals=0,
        bytes_accessed=mp * K * 2 + K * 128 * 2 + 128 * 4,
    )
    out = pl.pallas_call(
        functools.partial(_final_hinge_kernel, tm=tm, m_total=M, n_real=n_real,
                          inv_n_real=1.0 / n_real, inv_n_fake=1.0 / n_fake),
        grid=grid,
        in_specs=[
            pl.BlockSpec((tm, K), lambda i: (i, 0)),
            pl.BlockSpec((K, 128), lambda i: (0, 0)),
            pl.BlockSpec((1, 128), lambda i: (0, 0)),
        ],
        out_specs=pl.BlockSpec((1, 128), lambda i: (0, 0)),   # resident accumulator
        out_shape=jax.ShapeDtypeStruct((1, 128), jnp.float32),
        compiler_params=pltpu.CompilerParams(
            dimension_semantics=("arbitrary",),               # reduction over M blocks
            vmem_limit_bytes=_VMEM_LIMIT),
        cost_estimate=cost,
    )(cols_bf16, w, b)
    return lam * out[0, 0]


# ----------------------------------------------------------------------------
# PatchGAN discriminator built on the Pallas kernels
# ----------------------------------------------------------------------------
# (cout, stride, apply_leaky_relu); kernel 4x4, pad 1 everywhere.  These are
# STATIC Python constants (not jit arguments) — fixes the tracer bug.
_DISC_CFG = ((32, 2, True), (64, 2, True), (1, 1, False))
_DISC_STRIDES = tuple(c[1] for c in _DISC_CFG)


def init_disc_params(key, in_ch):
    params = []
    cin = in_ch
    for cout, stride, act in _DISC_CFG:
        key, kw_, kb_ = jax.random.split(key, 3)
        # stored as (KH, KW, Cin, Cout) -> (KH*KW*Cin, Cout), matching im2col.
        w = 0.05 * jax.random.normal(kw_, (4, 4, cin, cout), jnp.float32)
        b = 0.01 * jax.random.normal(kb_, (cout,), jnp.float32)
        w_mat = w.reshape(4 * 4 * cin, cout)
        if not act:
            # final scoring layer: zero-pad Cout -> 128 lanes once, at init time,
            # so the fused kernel gets a lane-aligned weight with no runtime pads.
            w_mat = jnp.zeros((w_mat.shape[0], 128), jnp.float32).at[:, :cout].set(w_mat)
            b = jnp.zeros((128,), jnp.float32).at[:cout].set(b)
        params.append({'w': w_mat, 'b': b})
        cin = cout
    return params


def im2col(x_nhwc, kh, kw, stride, pad):
    """(N,H,W,C) -> ((N*oh*ow, kh*kw*C), (N, oh, ow)); static strided slices only."""
    x = jnp.pad(x_nhwc, ((0, 0), (pad, pad), (pad, pad), (0, 0)))
    N, H, W, C = x.shape
    oh = (H - kh) // stride + 1
    ow = (W - kw) // stride + 1
    patches = []
    for i in range(kh):
        for j in range(kw):
            patches.append(x[:, i:i + (oh - 1) * stride + 1:stride,
                              j:j + (ow - 1) * stride + 1:stride, :])
    cols = jnp.stack(patches, axis=3)                # (N, oh, ow, kh*kw, C)
    cols = cols.reshape(N * oh * ow, kh * kw * C)    # Cin innermost, matches weights
    return cols, (N, oh, ow)


def disc_hinge_loss(params, x_real_nchw, x_fake_nchw, lam):
    """lam * [ mean(relu(1 - D(real))) + mean(relu(1 + D(fake))) ] with shared D pass."""
    # One pass over concat([real, fake]) — weights are shared, halves launches.
    x = jnp.concatenate([x_real_nchw, x_fake_nchw], axis=0)
    x = jnp.transpose(x, (0, 2, 3, 1)).astype(jnp.bfloat16)     # NCHW -> NHWC, bf16
    b_real = x_real_nchw.shape[0]

    # Hidden conv layers (GEMM + bias + LeakyReLU).
    for layer_idx in range(len(params) - 1):
        stride = _DISC_STRIDES[layer_idx]
        cols, (N, oh, ow) = im2col(x, 4, 4, stride, 1)
        y = pallas_conv_gemm(cols, params[layer_idx]['w'], params[layer_idx]['b'],
                             apply_act=True)
        x = y.reshape(N, oh, ow, -1)

    # Final 1-channel conv fused with the hinge reduction.
    stride = _DISC_STRIDES[-1]
    cols, (N, oh, ow) = im2col(x, 4, 4, stride, 1)
    n_real = b_real * oh * ow            # leading rows of cols are the real batch
    return pallas_final_conv_hinge(cols, params[-1]['w'], params[-1]['b'],
                                   n_real=n_real, lam=lam)


# ----------------------------------------------------------------------------
# _loss_D.forward
# ----------------------------------------------------------------------------
def loss_D_forward(params_disc_S, params_disc_T, x_SA, x_TA, out_SAT, out_TAS,
                   lambda_mod_disc=1.0):
    # .detach() on generator outputs
    out_SAT = jax.lax.stop_gradient(out_SAT)
    out_TAS = jax.lax.stop_gradient(out_TAS)

    loss_disc = OrderedDict()
    if lambda_mod_disc:   # static Python truth test, matching the module
        # loss_disc['S'] = lambda * gan.D(disc_S, fake=out_TAS, real=x_SA)
        loss_disc['S'] = disc_hinge_loss(params_disc_S, x_SA, out_TAS, lambda_mod_disc)
        # loss_disc['T'] = lambda * gan.D(disc_T, fake=out_SAT, real=x_TA)
        loss_disc['T'] = disc_hinge_loss(params_disc_T, x_TA, out_SAT, lambda_mod_disc)
    return loss_disc


if __name__ == "__main__":
    key = jax.random.PRNGKey(0)
    k_pS, k_pT, k1, k2, k3, k4 = jax.random.split(key, 6)

    B, C, H, W = 2, 4, 16, 16
    params_disc_S = init_disc_params(k_pS, C)
    params_disc_T = init_disc_params(k_pT, C)

    x_SA = jax.random.normal(k1, (B, C, H, W), jnp.float32)
    x_TA = jax.random.normal(k2, (B, C, H, W), jnp.float32)
    out_SAT = jax.random.normal(k3, (B, C, H, W), jnp.float32)
    out_TAS = jax.random.normal(k4, (B, C, H, W), jnp.float32)

    # lambda_mod_disc stays a Python constant (closure), never a traced value.
    fwd = jax.jit(lambda pS, pT, xs, xt, o_sat, o_tas:
                  loss_D_forward(pS, pT, xs, xt, o_sat, o_tas, lambda_mod_disc=1.0))
    losses = fwd(params_disc_S, params_disc_T, x_SA, x_TA, out_SAT, out_TAS)
    jax.block_until_ready(losses)

    assert losses['S'].shape == () and losses['T'].shape == ()
    assert jnp.isfinite(losses['S']) and jnp.isfinite(losses['T'])
    print("KERNEL_OK")
</pallas_src>

<mosaic_0001>
module attributes {stable_mosaic.version = 11 : i64} {
  func.func @_gemm_bias_lrelu_kernel(%arg0: i32, %arg1: memref<256x64xbf16, #tpu.memory_space<vmem>>, %arg2: memref<64x32xbf16, #tpu.memory_space<vmem>>, %arg3: memref<1x32xf32, #tpu.memory_space<vmem>>, %arg4: memref<256x32xbf16, #tpu.memory_space<vmem>>) attributes {dimension_semantics = [#tpu.dimension_semantics<parallel>], iteration_bounds = array<i64: 1>, scalar_prefetch = 0 : i64, scratch_operands = 0 : i64, tpu.core_type = #tpu.core_type<tc>, window_params = [{transform_indices = @transform_0, window_bounds = array<i64: 256, 64>}, {pipeline_mode = #tpu.pipeline_mode<synchronous>, transform_indices = @transform_1, window_bounds = array<i64: 64, 32>}, {pipeline_mode = #tpu.pipeline_mode<synchronous>, transform_indices = @transform_2, window_bounds = array<i64: 1, 32>}, {transform_indices = @transform_3, window_bounds = array<i64: 256, 32>}]} {
    %c0 = arith.constant 0 : index
    %c0_0 = arith.constant 0 : index
    %0 = vector.load %arg1[%c0, %c0_0] : memref<256x64xbf16, #tpu.memory_space<vmem>>, vector<256x64xbf16>
    %c0_1 = arith.constant 0 : index
    %c0_2 = arith.constant 0 : index
    %1 = vector.load %arg2[%c0_1, %c0_2] : memref<64x32xbf16, #tpu.memory_space<vmem>>, vector<64x32xbf16>
    %cst = arith.constant dense<0.000000e+00> : vector<256x32xf32>
    %2 = tpu.matmul %0, %1, %cst {dimension_numbers = #tpu.dot_dimension_numbers<[1], [0], [0], [1], [0, 0, 1, 1], [], []>} : vector<256x64xbf16>, vector<64x32xbf16>, vector<256x32xf32> -> vector<256x32xf32>
    %c0_3 = arith.constant 0 : index
    %c0_4 = arith.constant 0 : index
    %3 = vector.load %arg3[%c0_3, %c0_4] : memref<1x32xf32, #tpu.memory_space<vmem>>, vector<1x32xf32>
    %4 = vector.broadcast %3 : vector<1x32xf32> to vector<256x32xf32>
    %5 = arith.addf %2, %4 : vector<256x32xf32>
    %cst_5 = arith.constant 0.000000e+00 : f32
    %6 = vector.broadcast %cst_5 : f32 to vector<256x32xf32>
    %7 = arith.cmpf oge, %5, %6 : vector<256x32xf32>
    %cst_6 = arith.constant 2.000000e-01 : f32
    %8 = vector.broadcast %cst_6 : f32 to vector<256x32xf32>
    %9 = arith.mulf %8, %5 : vector<256x32xf32>
    %10 = arith.select %7, %5, %9 : vector<256x32xi1>, vector<256x32xf32>
    %11 = arith.truncf %10 : vector<256x32xf32> to vector<256x32xbf16>
    %c0_7 = arith.constant 0 : index
    %c0_8 = arith.constant 0 : index
    %12 = vector.load %arg4[%c0_7, %c0_8] : memref<256x32xbf16, #tpu.memory_space<vmem>>, vector<256x32xbf16>
    tpu.vector_store %arg4[%c0_7, %c0_8], %11 {strides = array<i32>} : memref<256x32xbf16, #tpu.memory_space<vmem>>, vector<256x32xbf16>,
    return
  }
  func.func @transform_0(%arg0: i32) -> (i32, i32) {
    %c0_i32 = arith.constant 0 : i32
    %c0_i32_0 = arith.constant 0 : i32
    return %arg0, %c0_i32 : i32, i32
  }
  func.func @transform_1(%arg0: i32) -> (i32, i32) {
    %c0_i32 = arith.constant 0 : i32
    %c0_i32_0 = arith.constant 0 : i32
    %c0_i32_1 = arith.constant 0 : i32
    return %c0_i32, %c0_i32_0 : i32, i32
  }
  func.func @transform_2(%arg0: i32) -> (i32, i32) {
    %c0_i32 = arith.constant 0 : i32
    %c0_i32_0 = arith.constant 0 : i32
    %c0_i32_1 = arith.constant 0 : i32
    return %c0_i32, %c0_i32_0 : i32, i32
  }
  func.func @transform_3(%arg0: i32) -> (i32, i32) {
    %c0_i32 = arith.constant 0 : i32
    %c0_i32_0 = arith.constant 0 : i32
    return %arg0, %c0_i32 : i32, i32
  }
}

module attributes {stable_mosaic.version = 11 : i64} {
  func.func @_gemm_bias_lrelu_kernel(%arg0: i32, %arg1: memref<64x512xbf16, #tpu.memory_space<vmem>>, %arg2: memref<512x64xbf16, #tpu.memory_space<vmem>>, %arg3: memref<1x64xf32, #tpu.memory_space<vmem>>, %arg4: memref<64x64xbf16, #tpu.memory_space<vmem>>) attributes {dimension_semantics = [#tpu.dimension_semantics<parallel>], iteration_bounds = array<i64: 1>, scalar_prefetch = 0 : i64, scratch_operands = 0 : i64, tpu.core_type = #tpu.core_type<tc>, window_params = [{transform_indices = @transform_0, window_bounds = array<i64: 64, 512>}, {pipeline_mode = #tpu.pipeline_mode<synchronous>, transform_indices = @transform_1, window_bounds = array<i64: 512, 64>}, {pipeline_mode = #tpu.pipeline_mode<synchronous>, transform_indices = @transform_2, window_bounds = array<i64: 1, 64>}, {transform_indices = @transform_3, window_bounds = array<i64: 64, 64>}]} {
    %c0 = arith.constant 0 : index
    %c0_0 = arith.constant 0 : index
    %0 = vector.load %arg1[%c0, %c0_0] : memref<64x512xbf16, #tpu.memory_space<vmem>>, vector<64x512xbf16>
    %c0_1 = arith.constant 0 : index
    %c0_2 = arith.constant 0 : index
    %1 = vector.load %arg2[%c0_1, %c0_2] : memref<512x64xbf16, #tpu.memory_space<vmem>>, vector<512x64xbf16>
    %cst = arith.constant dense<0.000000e+00> : vector<64x64xf32>
    %2 = tpu.matmul %0, %1, %cst {dimension_numbers = #tpu.dot_dimension_numbers<[1], [0], [0], [1], [0, 0, 1, 1], [], []>} : vector<64x512xbf16>, vector<512x64xbf16>, vector<64x64xf32> -> vector<64x64xf32>
    %c0_3 = arith.constant 0 : index
    %c0_4 = arith.constant 0 : index
    %3 = vector.load %arg3[%c0_3, %c0_4] : memref<1x64xf32, #tpu.memory_space<vmem>>, vector<1x64xf32>
    %4 = vector.broadcast %3 : vector<1x64xf32> to vector<64x64xf32>
    %5 = arith.addf %2, %4 : vector<64x64xf32>
    %cst_5 = arith.constant 0.000000e+00 : f32
    %6 = vector.broadcast %cst_5 : f32 to vector<64x64xf32>
    %7 = arith.cmpf oge, %5, %6 : vector<64x64xf32>
    %cst_6 = arith.constant 2.000000e-01 : f32
    %8 = vector.broadcast %cst_6 : f32 to vector<64x64xf32>
    %9 = arith.mulf %8, %5 : vector<64x64xf32>
    %10 = arith.select %7, %5, %9 : vector<64x64xi1>, vector<64x64xf32>
    %11 = arith.truncf %10 : vector<64x64xf32> to vector<64x64xbf16>
    %c0_7 = arith.constant 0 : index
    %c0_8 = arith.constant 0 : index
    %12 = vector.load %arg4[%c0_7, %c0_8] : memref<64x64xbf16, #tpu.memory_space<vmem>>, vector<64x64xbf16>
    tpu.vector_store %arg4[%c0_7, %c0_8], %11 {strides = array<i32>} : memref<64x64xbf16, #tpu.memory_space<vmem>>, vector<64x64xbf16>,
    return
  }
  func.func @transform_0(%arg0: i32) -> (i32, i32) {
    %c0_i32 = arith.constant 0 : i32
    %c0_i32_0 = arith.constant 0 : i32
    return %arg0, %c0_i32 : i32, i32
  }
  func.func @transform_1(%arg0: i32) -> (i32, i32) {
    %c0_i32 = arith.constant 0 : i32
    %c0_i32_0 = arith.constant 0 : i32
    %c0_i32_1 = arith.constant 0 : i32
    return %c0_i32, %c0_i32_0 : i32, i32
  }
  func.func @transform_2(%arg0: i32) -> (i32, i32) {
    %c0_i32 = arith.constant 0 : i32
    %c0_i32_0 = arith.constant 0 : i32
    %c0_i32_1 = arith.constant 0 : i32
    return %c0_i32, %c0_i32_0 : i32, i32
  }
  func.func @transform_3(%arg0: i32) -> (i32, i32) {
    %c0_i32 = arith.constant 0 : i32
    %c0_i32_0 = arith.constant 0 : i32
    return %arg0, %c0_i32 : i32, i32
  }
}

module attributes {stable_mosaic.version = 11 : i64} {
  func.func @_final_hinge_kernel(%arg0: i32, %arg1: memref<40x1024xbf16, #tpu.memory_space<vmem>>, %arg2: memref<1024x128xbf16, #tpu.memory_space<vmem>>, %arg3: memref<1x128xf32, #tpu.memory_space<vmem>>, %arg4: memref<1x128xf32, #tpu.memory_space<vmem>>) attributes {dimension_semantics = [#tpu.dimension_semantics<arbitrary>], iteration_bounds = array<i64: 1>, scalar_prefetch = 0 : i64, scratch_operands = 0 : i64, tpu.core_type = #tpu.core_type<tc>, window_params = [{transform_indices = @transform_0, window_bounds = array<i64: 40, 1024>}, {pipeline_mode = #tpu.pipeline_mode<synchronous>, transform_indices = @transform_1, window_bounds = array<i64: 1024, 128>}, {pipeline_mode = #tpu.pipeline_mode<synchronous>, transform_indices = @transform_2, window_bounds = array<i64: 1, 128>}, {pipeline_mode = #tpu.pipeline_mode<synchronous>, transform_indices = @transform_3, window_bounds = array<i64: 1, 128>}]} {
    %c0_i32 = arith.constant 0 : i32
    %0 = arith.cmpi eq, %arg0, %c0_i32 : i32
    %1 = arith.extui %0 : i1 to i32
    %c0_i32_0 = arith.constant 0 : i32
    %2 = arith.cmpi ne, %1, %c0_i32_0 : i32
    scf.if %2 {
      %cst_18 = arith.constant 0.000000e+00 : f32
      %37 = vector.broadcast %cst_18 : f32 to vector<1x128xf32>
      %c0_19 = arith.constant 0 : index
      %c0_20 = arith.constant 0 : index
      %38 = vector.load %arg4[%c0_19, %c0_20] : memref<1x128xf32, #tpu.memory_space<vmem>>, vector<1x128xf32>
      tpu.vector_store %arg4[%c0_19, %c0_20], %37 {strides = array<i32>} : memref<1x128xf32, #tpu.memory_space<vmem>>, vector<1x128xf32>,
    } else {
    }
    %c0 = arith.constant 0 : index
    %c0_1 = arith.constant 0 : index
    %3 = vector.load %arg1[%c0, %c0_1] : memref<40x1024xbf16, #tpu.memory_space<vmem>>, vector<40x1024xbf16>
    %c0_2 = arith.constant 0 : index
    %c0_3 = arith.constant 0 : index
    %4 = vector.load %arg2[%c0_2, %c0_3] : memref<1024x128xbf16, #tpu.memory_space<vmem>>, vector<1024x128xbf16>
    %cst = arith.constant dense<0.000000e+00> : vector<40x128xf32>
    %5 = tpu.matmul %3, %4, %cst {dimension_numbers = #tpu.dot_dimension_numbers<[1], [0], [0], [1], [0, 0, 1, 1], [], []>} : vector<40x1024xbf16>, vector<1024x128xbf16>, vector<40x128xf32> -> vector<40x128xf32>
    %c0_4 = arith.constant 0 : index
    %c0_5 = arith.constant 0 : index
    %6 = vector.load %arg3[%c0_4, %c0_5] : memref<1x128xf32, #tpu.memory_space<vmem>>, vector<1x128xf32>
    %7 = vector.broadcast %6 : vector<1x128xf32> to vector<40x128xf32>
    %8 = arith.addf %5, %7 : vector<40x128xf32>
    %9 = tpu.iota {dimensions = array<i32: 0>} : vector<40x128xi32>
    %c40_i32 = arith.constant 40 : i32
    %10 = arith.muli %arg0, %c40_i32 : i32
    %11 = vector.broadcast %10 : i32 to vector<40x128xi32>
    %12 = arith.addi %9, %11 : vector<40x128xi32>
    %c36_i32 = arith.constant 36 : i32
    %13 = vector.broadcast %c36_i32 : i32 to vector<40x128xi32>
    %14 = arith.cmpi slt, %12, %13 : vector<40x128xi32>
    %c18_i32 = arith.constant 18 : i32
    %15 = vector.broadcast %c18_i32 : i32 to vector<40x128xi32>
    %16 = arith.cmpi slt, %12, %15 : vector<40x128xi32>
    %cst_6 = arith.constant 1.000000e+00 : f32
    %17 = vector.broadcast %cst_6 : f32 to vector<40x128xf32>
    %18 = arith.subf %17, %8 : vector<40x128xf32>
    %cst_7 = arith.constant 0.000000e+00 : f32
    %19 = vector.broadcast %cst_7 : f32 to vector<40x128xf32>
    %20 = arith.maximumf %19, %18 : vector<40x128xf32>
    %cst_8 = arith.constant 0.055555556 : f32
    %21 = vector.broadcast %cst_8 : f32 to vector<40x128xf32>
    %22 = arith.mulf %20, %21 : vector<40x128xf32>
    %cst_9 = arith.constant 1.000000e+00 : f32
    %23 = vector.broadcast %cst_9 : f32 to vector<40x128xf32>
    %24 = arith.addf %23, %8 : vector<40x128xf32>
    %cst_10 = arith.constant 0.000000e+00 : f32
    %25 = vector.broadcast %cst_10 : f32 to vector<40x128xf32>
    %26 = arith.maximumf %25, %24 : vector<40x128xf32>
    %cst_11 = arith.constant 0.055555556 : f32
    %27 = vector.broadcast %cst_11 : f32 to vector<40x128xf32>
    %28 = arith.mulf %26, %27 : vector<40x128xf32>
    %29 = arith.select %16, %22, %28 : vector<40x128xi1>, vector<40x128xf32>
    %cst_12 = arith.constant 0.000000e+00 : f32
    %30 = vector.broadcast %cst_12 : f32 to vector<40x128xf32>
    %31 = arith.select %14, %29, %30 : vector<40x128xi1>, vector<40x128xf32>
    %c0_13 = arith.constant 0 : index
    %c0_14 = arith.constant 0 : index
    %32 = vector.load %arg4[%c0_13, %c0_14] : memref<1x128xf32, #tpu.memory_space<vmem>>, vector<1x128xf32>
    %cst_15 = arith.constant dense<0.000000e+00> : vector<128xf32>
    %33 = vector.multi_reduction <add>, %31, %cst_15 [0] : vector<40x128xf32> to vector<128xf32>
    %34 = vector.shape_cast %33 : vector<128xf32> to vector<1x128xf32>
    %35 = arith.addf %32, %34 : vector<1x128xf32>
    %c0_16 = arith.constant 0 : index
    %c0_17 = arith.constant 0 : index
    %36 = vector.load %arg4[%c0_16, %c0_17] : memref<1x128xf32, #tpu.memory_space<vmem>>, vector<1x128xf32>
    tpu.vector_store %arg4[%c0_16, %c0_17], %35 {strides = array<i32>} : memref<1x128xf32, #tpu.memory_space<vmem>>, vector<1x128xf32>,
    return
  }
  func.func @transform_0(%arg0: i32) -> (i32, i32) {
    %c0_i32 = arith.constant 0 : i32
    %c0_i32_0 = arith.constant 0 : i32
    return %arg0, %c0_i32 : i32, i32
  }
  func.func @transform_1(%arg0: i32) -> (i32, i32) {
    %c0_i32 = arith.constant 0 : i32
    %c0_i32_0 = arith.constant 0 : i32
    %c0_i32_1 = arith.constant 0 : i32
    return %c0_i32, %c0_i32_0 : i32, i32
  }
  func.func @transform_2(%arg0: i32) -> (i32, i32) {
    %c0_i32 = arith.constant 0 : i32
    %c0_i32_0 = arith.constant 0 : i32
    %c0_i32_1 = arith.constant 0 : i32
    return %c0_i32, %c0_i32_0 : i32, i32
  }
  func.func @transform_3(%arg0: i32) -> (i32, i32) {
    %c0_i32 = arith.constant 0 : i32
    %c0_i32_0 = arith.constant 0 : i32
    %c0_i32_1 = arith.constant 0 : i32
    return %c0_i32, %c0_i32_0 : i32, i32
  }
}

</mosaic_0001>

<llo_original>
// kernel: _lambda_.9
$region0: #{_lambda_.9}
  #allocation0 [shape = 'u32[]', space=smem, size = 0x4, offset = 0x4, fixed_abs, tag = 'smem constant byte address 0x4 - core index']
  #allocation1 [shape = 'u32[144,128]{1,0:T(1,128)}', space=vmem, size = 0x12000, scoped, tag = 'internal scratch']
  %s0 = inlined_call_operand.vmem [shape: bf16[256,64], index: 0, kind: input, shape index: {}]
  %s1 = inlined_call_operand.vmem [shape: bf16[64,32], index: 1, kind: input, shape index: {}]
  %s2 = inlined_call_operand.vmem [shape: f32[1,32], index: 2, kind: input, shape index: {}]
  %s3 = inlined_call_operand.vmem [shape: bf16[256,32], index: 3, kind: output, shape index: {}]
  %s4 = sld [smem:[#allocation0]]
  $region22: #{_lambda_.9} parent=0
    _
  %s6 = ssub.s32 1, %s4
  %s7 = scalar_select 0, %s6, %s4
  // Predicated region
  $region2: #{_lambda_.9} parent=0 // pred_check
    _
  $region3: #{_lambda_.9} parent=0 // pred_check_branch
    %9 = sbr.rel (0) target = $region5
  $region4: #{_lambda_.9} parent=0 // pred_region
    _
  $region5: #{_lambda_.9} parent=0 // pred_fallthru
    _
  // Predicated region
  $region6: #{_lambda_.9} parent=0 // pred_check
    _
  $region7: #{_lambda_.9} parent=0 // pred_check_branch
    %11 = sbr.rel (0) target = $region9
  $region8: #{_lambda_.9} parent=0 // pred_region
    _
  $region9: #{_lambda_.9} parent=0 // pred_fallthru
    _
  // Predicated region
  $region10: #{_lambda_.9} parent=0 // pred_check
    _
  $region11: #{_lambda_.9} parent=0 // pred_check_branch
    %13 = sbr.rel (0) target = $region13
  $region12: #{_lambda_.9} parent=0 // pred_region
    _
  $region13: #{_lambda_.9} parent=0 // pred_fallthru
    _
  %v15 = vld [vmem:[%s0] sm:$0xf]
  %v16 = vld [vmem:[%s0 + $0x4] sm:$0xf]
  %v17 = vld [vmem:[%s0 + $0x8] sm:$0xf]
  %v18 = vld [vmem:[%s0 + $0xc] sm:$0xf]
  %v19 = vld [vmem:[%s0 + $0x10] sm:$0xf]
  %v20 = vld [vmem:[%s0 + $0x14] sm:$0xf]
  %v21 = vld [vmem:[%s0 + $0x18] sm:$0xf]
  %v22 = vld [vmem:[%s0 + $0x1c] sm:$0xf]
  %v23 = vld [vmem:[%s0 + $0x20] sm:$0xf]
  %v24 = vld [vmem:[%s0 + $0x24] sm:$0xf]
  %v25 = vld [vmem:[%s0 + $0x28] sm:$0xf]
  %v26 = vld [vmem:[%s0 + $0x2c] sm:$0xf]
  %v27 = vld [vmem:[%s0 + $0x30] sm:$0xf]
  %v28 = vld [vmem:[%s0 + $0x34] sm:$0xf]
  %v29 = vld [vmem:[%s0 + $0x38] sm:$0xf]
  %v30 = vld [vmem:[%s0 + $0x3c] sm:$0xf]
  %v31 = vld [vmem:[%s0 + $0x40] sm:$0xf]
  %v32 = vld [vmem:[%s0 + $0x44] sm:$0xf]
  %v33 = vld [vmem:[%s0 + $0x48] sm:$0xf]
  %v34 = vld [vmem:[%s0 + $0x4c] sm:$0xf]
  %v35 = vld [vmem:[%s0 + $0x50] sm:$0xf]
  %v36 = vld [vmem:[%s0 + $0x54] sm:$0xf]
  %v37 = vld [vmem:[%s0 + $0x58] sm:$0xf]
  %v38 = vld [vmem:[%s0 + $0x5c] sm:$0xf]
  %v39 = vld [vmem:[%s0 + $0x60] sm:$0xf]
  %v40 = vld [vmem:[%s0 + $0x64] sm:$0xf]
  %v41 = vld [vmem:[%s0 + $0x68] sm:$0xf]
  %v42 = vld [vmem:[%s0 + $0x6c] sm:$0xf]
  %v43 = vld [vmem:[%s0 + $0x70] sm:$0xf]
  %v44 = vld [vmem:[%s0 + $0x74] sm:$0xf]
  %v45 = vld [vmem:[%s0 + $0x78] sm:$0xf]
  %v46 = vld [vmem:[%s0 + $0x7c] sm:$0xf]
  %v47 = vld [vmem:[%s1] sm:$0xf]
  %v48 = vld [vmem:[%s1 + $0x4] sm:$0xf]
  %v49 = vld [vmem:[%s1 + $0x8] sm:$0xf]
  %v50 = vld [vmem:[%s1 + $0xc] sm:$0xf]
  %v51 = vld [vmem:[%s1 + $0x10] sm:$0xf]
  %v52 = vld [vmem:[%s1 + $0x14] sm:$0xf]
  %v53 = vld [vmem:[%s1 + $0x18] sm:$0xf]
  %v54 = vld [vmem:[%s1 + $0x1c] sm:$0xf]
  %v55 = vld [vmem:[%s2] sm:$0x1]
  %v57 = vlaneseq
  %v58 = vshrl.u32 %v57, 7
  %v59 = vsub.s32 0, %v58
  %v60 = vrot.slane %v55, %v59
  %v94 = vunpack.c.l.b16 %v15
  %v95 = vunpack.c.l.b16 %v16
  %v96 = vunpack.c.l.b16 %v17
  %v97 = vunpack.c.l.b16 %v18
  %v98 = vunpack.c.l.b16 %v19
  %v99 = vunpack.c.l.b16 %v20
  %v100 = vunpack.c.l.b16 %v21
  %v101 = vunpack.c.l.b16 %v22
  %v102 = vunpack.c.l.b16 %v23
  %v103 = vunpack.c.l.b16 %v24
  %v104 = vunpack.c.l.b16 %v25
  %v105 = vunpack.c.l.b16 %v26
  %v106 = vunpack.c.l.b16 %v27
  %v107 = vunpack.c.l.b16 %v28
  %v108 = vunpack.c.l.b16 %v29
  %v109 = vunpack.c.l.b16 %v30
  %v110 = vunpack.c.l.b16 %v31
  %v111 = vunpack.c.l.b16 %v32
  %v112 = vunpack.c.l.b16 %v33
  %v113 = vunpack.c.l.b16 %v34
  %v114 = vunpack.c.l.b16 %v35
  %v115 = vunpack.c.l.b16 %v36
  %v116 = vunpack.c.l.b16 %v37
  %v117 = vunpack.c.l.b16 %v38
  %v118 = vunpack.c.l.b16 %v39
  %v119 = vunpack.c.l.b16 %v40
  %v120 = vunpack.c.l.b16 %v41
  %v121 = vunpack.c.l.b16 %v42
  %v122 = vunpack.c.l.b16 %v43
  %v123 = vunpack.c.l.b16 %v44
  %v124 = vunpack.c.l.b16 %v45
  %v125 = vunpack.c.l.b16 %v46
  %v126 = vpack.c.b16 %v95, %v94
  %v127 = vpack.c.b16 %v97, %v96
  %v128 = vpack.c.b16 %v99, %v98
  %v129 = vpack.c.b16 %v101, %v100
  %v130 = vpack.c.b16 %v103, %v102
  %v131 = vpack.c.b16 %v105, %v104
  %v132 = vpack.c.b16 %v107, %v106
  %v133 = vpack.c.b16 %v109, %v108
  %v134 = vpack.c.b16 %v111, %v110
  %v135 = vpack.c.b16 %v113, %v112
  %v136 = vpack.c.b16 %v115, %v114
  %v137 = vpack.c.b16 %v117, %v116
  %v138 = vpack.c.b16 %v119, %v118
  %v139 = vpack.c.b16 %v121, %v120
  %v140 = vpack.c.b16 %v123, %v122
  %v141 = vpack.c.b16 %v125, %v124
  %v150 = vunpack.c.l.b16 %v47
  %v151 = vunpack.c.l.b16 %v48
  %v152 = vunpack.c.l.b16 %v49
  %v153 = vunpack.c.l.b16 %v50
  %v154 = vunpack.c.l.b16 %v51
  %v155 = vunpack.c.l.b16 %v52
  %v156 = vunpack.c.l.b16 %v53
  %v157 = vunpack.c.l.b16 %v54
  %v158 = vpack.c.b16 %v151, %v150
  %v159 = vpack.c.b16 %v153, %v152
  %v160 = vpack.c.b16 %v155, %v154
  %v161 = vpack.c.b16 %v157, %v156
  %vm166 = vcmask 523264
  %v168 = vsel %vm166, %v126, 0
  %v171 = vsel %vm166, %v127, 0
  %v174 = vsel %vm166, %v128, 0
  %v177 = vsel %vm166, %v129, 0
  %v180 = vsel %vm166, %v130, 0
  %v183 = vsel %vm166, %v131, 0
  %v186 = vsel %vm166, %v132, 0
  %v189 = vsel %vm166, %v133, 0
  %v192 = vsel %vm166, %v134, 0
  %v195 = vsel %vm166, %v135, 0
  %v198 = vsel %vm166, %v136, 0
  %v201 = vsel %vm166, %v137, 0
  %v204 = vsel %vm166, %v138, 0
  %v207 = vsel %vm166, %v139, 0
  %v210 = vsel %vm166, %v140, 0
  %v213 = vsel %vm166, %v141, 0
  %215 = vmatprep.subr.bf16.mxu0 0
  %216 = vmatpush1.bf16.msra.mxu0 %v158
  %217 = vmatprep.subr.bf16.mxu0 0
  %218 = vmatpush1.bf16.msra.mxu0 %v159
  %219 = vmatprep.subr.bf16.mxu0 0
  %220 = vmatpush1.bf16.msra.mxu0 %v160
  %221 = vmatprep.subr.bf16.mxu0 0
  %222 = vmatpush1.bf16.msra.mxu0 %v161
  %223 = vmatprep.subr.bf16.mxu0 0
  %224 = vmatpush1.bf16.msra.mxu0 0
  %225 = vmatprep.subr.bf16.mxu0 0
  %226 = vmatpush1.bf16.msra.mxu0 0
  %227 = vmatprep.subr.bf16.mxu0 0
  %228 = vmatpush1.bf16.msra.mxu0 0
  %229 = vmatprep.subr.bf16.mxu0 0
  %230 = vmatpush1.bf16.msra.mxu0 0
  %231 = vmatprep.subr.bf16.mxu0 0
  %232 = vmatpush1.bf16.msra.mxu0 0
  %233 = vmatprep.subr.bf16.mxu0 0
  %234 = vmatpush1.bf16.msra.mxu0 0
  %235 = vmatprep.subr.bf16.mxu0 0
  %236 = vmatpush1.bf16.msra.mxu0 0
  %237 = vmatprep.subr.bf16.mxu0 0
  %238 = vmatpush1.bf16.msra.mxu0 0
  %239 = vmatprep.subr.bf16.mxu0 0
  %240 = vmatpush1.bf16.msra.mxu0 0
  %241 = vmatprep.subr.bf16.mxu0 0
  %242 = vmatpush1.bf16.msra.mxu0 0
  %243 = vmatprep.subr.bf16.mxu0 0
  %244 = vmatpush1.bf16.msra.mxu0 0
  %245 = vmatprep.subr.bf16.mxu0 0
  %246 = vmatpush1.bf16.msra.mxu0 0
  %247 = vmatprep.mubr.bf16.mxu0 0
  %248 = vmatmul.mubr.bf16.gmra.mrb[0].mxu0 %v168
  %v249 = vpop.f32.mrb[0].mxu0
  %v250 = vadd.f32 %v60, %v249
  %v251 = vpop.f32.mrb[0].mxu0
  %v252 = vpop.f32.mrb[0].mxu0
  %v253 = vadd.f32 %v60, %v252
  %v254 = vpop.f32.mrb[0].mxu0
  %255 = vmatprep.mubr.bf16.mxu0 0
  %256 = vmatmul.mubr.bf16.gmra.mrb[0].mxu0 %v171
  %v257 = vpop.f32.mrb[0].mxu0
  %v258 = vadd.f32 %v60, %v257
  %v259 = vpop.f32.mrb[0].mxu0
  %v260 = vpop.f32.mrb[0].mxu0
  %v261 = vadd.f32 %v60, %v260
  %v262 = vpop.f32.mrb[0].mxu0
  %263 = vmatprep.mubr.bf16.mxu0 0
  %264 = vmatmul.mubr.bf16.gmra.mrb[0].mxu0 %v174
  %v265 = vpop.f32.mrb[0].mxu0
  %v266 = vadd.f32 %v60, %v265
  %v267 = vpop.f32.mrb[0].mxu0
  %v268 = vpop.f32.mrb[0].mxu0
  %v269 = vadd.f32 %v60, %v268
  %v270 = vpop.f32.mrb[0].mxu0
  %271 = vmatprep.mubr.bf16.mxu0 0
  %272 = vmatmul.mubr.bf16.gmra.mrb[0].mxu0 %v177
  %v273 = vpop.f32.mrb[0].mxu0
  %v274 = vadd.f32 %v60, %v273
  %v275 = vpop.f32.mrb[0].mxu0
  %v276 = vpop.f32.mrb[0].mxu0
  %v277 = vadd.f32 %v60, %v276
  %v278 = vpop.f32.mrb[0].mxu0
  %279 = vmatprep.mubr.bf16.mxu0 0
  %280 = vmatmul.mubr.bf16.gmra.mrb[0].mxu0 %v180
  %v281 = vpop.f32.mrb[0].mxu0
  %v282 = vadd.f32 %v60, %v281
  %v283 = vpop.f32.mrb[0].mxu0
  %v284 = vpop.f32.mrb[0].mxu0
  %v285 = vadd.f32 %v60, %v284
  %v286 = vpop.f32.mrb[0].mxu0
  %287 = vmatprep.mubr.bf16.mxu0 0
  %288 = vmatmul.mubr.bf16.gmra.mrb[0].mxu0 %v183
  %v289 = vpop.f32.mrb[0].mxu0
  %v290 = vadd.f32 %v60, %v289
  %v291 = vpop.f32.mrb[0].mxu0
  %v292 = vpop.f32.mrb[0].mxu0
  %v293 = vadd.f32 %v60, %v292
  %v294 = vpop.f32.mrb[0].mxu0
  %295 = vmatprep.mubr.bf16.mxu0 0
  %296 = vmatmul.mubr.bf16.gmra.mrb[0].mxu0 %v186
  %v297 = vpop.f32.mrb[0].mxu0
  %v298 = vadd.f32 %v60, %v297
  %v299 = vpop.f32.mrb[0].mxu0
  %v300 = vpop.f32.mrb[0].mxu0
  %v301 = vadd.f32 %v60, %v300
  %v302 = vpop.f32.mrb[0].mxu0
  %303 = vmatprep.mubr.bf16.mxu0 0
  %304 = vmatmul.mubr.bf16.gmra.mrb[0].mxu0 %v189
  %v305 = vpop.f32.mrb[0].mxu0
  %v306 = vadd.f32 %v60, %v305
  %v307 = vpop.f32.mrb[0].mxu0
  %v308 = vpop.f32.mrb[0].mxu0
  %v309 = vadd.f32 %v60, %v308
  %v310 = vpop.f32.mrb[0].mxu0
  %311 = vmatprep.mubr.bf16.mxu0 0
  %312 = vmatmul.mubr.bf16.gmra.mrb[0].mxu0 %v192
  %v313 = vpop.f32.mrb[0].mxu0
  %v314 = vadd.f32 %v60, %v313
  %v315 = vpop.f32.mrb[0].mxu0
  %v316 = vpop.f32.mrb[0].mxu0
  %v317 = vadd.f32 %v60, %v316
  %v318 = vpop.f32.mrb[0].mxu0
  %319 = vmatprep.mubr.bf16.mxu0 0
  %320 = vmatmul.mubr.bf16.gmra.mrb[0].mxu0 %v195
  %v321 = vpop.f32.mrb[0].mxu0
  %v322 = vadd.f32 %v60, %v321
  %v323 = vpop.f32.mrb[0].mxu0
  %v324 = vpop.f32.mrb[0].mxu0
  %v325 = vadd.f32 %v60, %v324
  %v326 = vpop.f32.mrb[0].mxu0
  %327 = vmatprep.mubr.bf16.mxu0 0
  %328 = vmatmul.mubr.bf16.gmra.mrb[0].mxu0 %v198
  %v329 = vpop.f32.mrb[0].mxu0
  %v330 = vadd.f32 %v60, %v329
  %v331 = vpop.f32.mrb[0].mxu0
  %v332 = vpop.f32.mrb[0].mxu0
  %v333 = vadd.f32 %v60, %v332
  %v334 = vpop.f32.mrb[0].mxu0
  %335 = vmatprep.mubr.bf16.mxu0 0
  %336 = vmatmul.mubr.bf16.gmra.mrb[0].mxu0 %v201
  %v337 = vpop.f32.mrb[0].mxu0
  %v338 = vadd.f32 %v60, %v337
  %v339 = vpop.f32.mrb[0].mxu0
  %v340 = vpop.f32.mrb[0].mxu0
  %v341 = vadd.f32 %v60, %v340
  %v342 = vpop.f32.mrb[0].mxu0
  %343 = vmatprep.mubr.bf16.mxu0 0
  %344 = vmatmul.mubr.bf16.gmra.mrb[0].mxu0 %v204
  %v345 = vpop.f32.mrb[0].mxu0
  %v346 = vadd.f32 %v60, %v345
  %v347 = vpop.f32.mrb[0].mxu0
  %v348 = vpop.f32.mrb[0].mxu0
  %v349 = vadd.f32 %v60, %v348
  %v350 = vpop.f32.mrb[0].mxu0
  %351 = vmatprep.mubr.bf16.mxu0 0
  %352 = vmatmul.mubr.bf16.gmra.mrb[0].mxu0 %v207
  %v353 = vpop.f32.mrb[0].mxu0
  %v354 = vadd.f32 %v60, %v353
  %v355 = vpop.f32.mrb[0].mxu0
  %v356 = vpop.f32.mrb[0].mxu0
  %v357 = vadd.f32 %v60, %v356
  %v358 = vpop.f32.mrb[0].mxu0
  %359 = vmatprep.mubr.bf16.mxu0 0
  %360 = vmatmul.mubr.bf16.gmra.mrb[0].mxu0 %v210
  %v361 = vpop.f32.mrb[0].mxu0
  %v362 = vadd.f32 %v60, %v361
  %v363 = vpop.f32.mrb[0].mxu0
  %v364 = vpop.f32.mrb[0].mxu0
  %v365 = vadd.f32 %v60, %v364
  %v366 = vpop.f32.mrb[0].mxu0
  %367 = vmatprep.mubr.bf16.mxu0 0
  %368 = vmatmul.mubr.bf16.gmra.mrb[0].mxu0 %v213
  %v369 = vpop.f32.mrb[0].mxu0
  %v370 = vadd.f32 %v60, %v369
  %v371 = vpop.f32.mrb[0].mxu0
  %v372 = vpop.f32.mrb[0].mxu0
  %v373 = vadd.f32 %v60, %v372
  %v374 = vpop.f32.mrb[0].mxu0
  %375 = vdwg.mxu0
  %vm376 = vcmp.ge.f32.partialorder %v250, 0.0
  %vm377 = vcmp.ge.f32.partialorder %v253, 0.0
  %vm378 = vcmp.ge.f32.partialorder %v258, 0.0
  %vm379 = vcmp.ge.f32.partialorder %v261, 0.0
  %vm380 = vcmp.ge.f32.partialorder %v266, 0.0
  %vm381 = vcmp.ge.f32.partialorder %v269, 0.0
  %vm382 = vcmp.ge.f32.partialorder %v274, 0.0
  %vm383 = vcmp.ge.f32.partialorder %v277, 0.0
  %vm384 = vcmp.ge.f32.partialorder %v282, 0.0
  %vm385 = vcmp.ge.f32.partialorder %v285, 0.0
  %vm386 = vcmp.ge.f32.partialorder %v290, 0.0
  %vm387 = vcmp.ge.f32.partialorder %v293, 0.0
  %vm388 = vcmp.ge.f32.partialorder %v298, 0.0
  %vm389 = vcmp.ge.f32.partialorder %v301, 0.0
  %vm390 = vcmp.ge.f32.partialorder %v306, 0.0
  %vm391 = vcmp.ge.f32.partialorder %v309, 0.0
  %vm392 = vcmp.ge.f32.partialorder %v314, 0.0
  %vm393 = vcmp.ge.f32.partialorder %v317, 0.0
  %vm394 = vcmp.ge.f32.partialorder %v322, 0.0
  %vm395 = vcmp.ge.f32.partialorder %v325, 0.0
  %vm396 = vcmp.ge.f32.partialorder %v330, 0.0
  %vm397 = vcmp.ge.f32.partialorder %v333, 0.0
  %vm398 = vcmp.ge.f32.partialorder %v338, 0.0
  %vm399 = vcmp.ge.f32.partialorder %v341, 0.0
  %vm400 = vcmp.ge.f32.partialorder %v346, 0.0
  %vm401 = vcmp.ge.f32.partialorder %v349, 0.0
  %vm402 = vcmp.ge.f32.partialorder %v354, 0.0
  %vm403 = vcmp.ge.f32.partialorder %v357, 0.0
  %vm404 = vcmp.ge.f32.partialorder %v362, 0.0
  %vm405 = vcmp.ge.f32.partialorder %v365, 0.0
  %vm406 = vcmp.ge.f32.partialorder %v370, 0.0
  %vm407 = vcmp.ge.f32.partialorder %v373, 0.0
  %v408 = vmul.f32 %v250, 0.2
  %v409 = vmul.f32 %v253, 0.2
  %v410 = vmul.f32 %v258, 0.2
  %v411 = vmul.f32 %v261, 0.2
  %v412 = vmul.f32 %v266, 0.2
  %v413 = vmul.f32 %v269, 0.2
  %v414 = vmul.f32 %v274, 0.2
  %v415 = vmul.f32 %v277, 0.2
  %v416 = vmul.f32 %v282, 0.2
  %v417 = vmul.f32 %v285, 0.2
  %v418 = vmul.f32 %v290, 0.2
  %v419 = vmul.f32 %v293, 0.2
  %v420 = vmul.f32 %v298, 0.2
  %v421 = vmul.f32 %v301, 0.2
  %v422 = vmul.f32 %v306, 0.2
  %v423 = vmul.f32 %v309, 0.2
  %v424 = vmul.f32 %v314, 0.2
  %v425 = vmul.f32 %v317, 0.2
  %v426 = vmul.f32 %v322, 0.2
  %v427 = vmul.f32 %v325, 0.2
  %v428 = vmul.f32 %v330, 0.2
  %v429 = vmul.f32 %v333, 0.2
  %v430 = vmul.f32 %v338, 0.2
  %v431 = vmul.f32 %v341, 0.2
  %v432 = vmul.f32 %v346, 0.2
  %v433 = vmul.f32 %v349, 0.2
  %v434 = vmul.f32 %v354, 0.2
  %v435 = vmul.f32 %v357, 0.2
  %v436 = vmul.f32 %v362, 0.2
  %v437 = vmul.f32 %v365, 0.2
  %v438 = vmul.f32 %v370, 0.2
  %v439 = vmul.f32 %v373, 0.2
  %v440 = vsel %vm376, %v250, %v408
  %v441 = vsel %vm377, %v253, %v409
  %v442 = vsel %vm378, %v258, %v410
  %v443 = vsel %vm379, %v261, %v411
  %v444 = vsel %vm380, %v266, %v412
  %v445 = vsel %vm381, %v269, %v413
  %v446 = vsel %vm382, %v274, %v414
  %v447 = vsel %vm383, %v277, %v415
  %v448 = vsel %vm384, %v282, %v416
  %v449 = vsel %vm385, %v285, %v417
  %v450 = vsel %vm386, %v290, %v418
  %v451 = vsel %vm387, %v293, %v419
  %v452 = vsel %vm388, %v298, %v420
  %v453 = vsel %vm389, %v301, %v421
  %v454 = vsel %vm390, %v306, %v422
  %v455 = vsel %vm391, %v309, %v423
  %v456 = vsel %vm392, %v314, %v424
  %v457 = vsel %vm393, %v317, %v425
  %v458 = vsel %vm394, %v322, %v426
  %v459 = vsel %vm395, %v325, %v427
  %v460 = vsel %vm396, %v330, %v428
  %v461 = vsel %vm397, %v333, %v429
  %v462 = vsel %vm398, %v338, %v430
  %v463 = vsel %vm399, %v341, %v431
  %v464 = vsel %vm400, %v346, %v432
  %v465 = vsel %vm401, %v349, %v433
  %v466 = vsel %vm402, %v354, %v434
  %v467 = vsel %vm403, %v357, %v435
  %v468 = vsel %vm404, %v362, %v436
  %v469 = vsel %vm405, %v365, %v437
  %v470 = vsel %vm406, %v370, %v438
  %v471 = vsel %vm407, %v373, %v439
  %v472 = vpack.c.bf16 %v441, %v440
  %v473 = vpack.c.bf16 %v443, %v442
  %v474 = vpack.c.bf16 %v445, %v444
  %v475 = vpack.c.bf16 %v447, %v446
  %v476 = vpack.c.bf16 %v449, %v448
  %v477 = vpack.c.bf16 %v451, %v450
  %v478 = vpack.c.bf16 %v453, %v452
  %v479 = vpack.c.bf16 %v455, %v454
  %v480 = vpack.c.bf16 %v457, %v456
  %v481 = vpack.c.bf16 %v459, %v458
  %v482 = vpack.c.bf16 %v461, %v460
  %v483 = vpack.c.bf16 %v463, %v462
  %v484 = vpack.c.bf16 %v465, %v464
  %v485 = vpack.c.bf16 %v467, %v466
  %v486 = vpack.c.bf16 %v469, %v468
  %v487 = vpack.c.bf16 %v471, %v470
  %v504 = vunpack.c.l.b16 %v472
  %v505 = vunpack.c.h.b16 %v472
  %v506 = vunpack.c.l.b16 %v473
  %v507 = vunpack.c.h.b16 %v473
  %v508 = vunpack.c.l.b16 %v474
  %v509 = vunpack.c.h.b16 %v474
  %v510 = vunpack.c.l.b16 %v475
  %v511 = vunpack.c.h.b16 %v475
  %v512 = vunpack.c.l.b16 %v476
  %v513 = vunpack.c.h.b16 %v476
  %v514 = vunpack.c.l.b16 %v477
  %v515 = vunpack.c.h.b16 %v477
  %v516 = vunpack.c.l.b16 %v478
  %v517 = vunpack.c.h.b16 %v478
  %v518 = vunpack.c.l.b16 %v479
  %v519 = vunpack.c.h.b16 %v479
  %v520 = vunpack.c.l.b16 %v480
  %v521 = vunpack.c.h.b16 %v480
  %v522 = vunpack.c.l.b16 %v481
  %v523 = vunpack.c.h.b16 %v481
  %v524 = vunpack.c.l.b16 %v482
  %v525 = vunpack.c.h.b16 %v482
  %v526 = vunpack.c.l.b16 %v483
  %v527 = vunpack.c.h.b16 %v483
  %v528 = vunpack.c.l.b16 %v484
  %v529 = vunpack.c.h.b16 %v484
  %v530 = vunpack.c.l.b16 %v485
  %v531 = vunpack.c.h.b16 %v485
  %v532 = vunpack.c.l.b16 %v486
  %v533 = vunpack.c.h.b16 %v486
  %v534 = vunpack.c.l.b16 %v487
  %v535 = vunpack.c.h.b16 %v487
  %v536 = vpack.c.b16 %v504, %v504
  %v537 = vpack.c.b16 %v505, %v505
  %v538 = vpack.c.b16 %v506, %v506
  %v539 = vpack.c.b16 %v507, %v507
  %v540 = vpack.c.b16 %v508, %v508
  %v541 = vpack.c.b16 %v509, %v509
  %v542 = vpack.c.b16 %v510, %v510
  %v543 = vpack.c.b16 %v511, %v511
  %v544 = vpack.c.b16 %v512, %v512
  %v545 = vpack.c.b16 %v513, %v513
  %v546 = vpack.c.b16 %v514, %v514
  %v547 = vpack.c.b16 %v515, %v515
  %v548 = vpack.c.b16 %v516, %v516
  %v549 = vpack.c.b16 %v517, %v517
  %v550 = vpack.c.b16 %v518, %v518
  %v551 = vpack.c.b16 %v519, %v519
  %v552 = vpack.c.b16 %v520, %v520
  %v553 = vpack.c.b16 %v521, %v521
  %v554 = vpack.c.b16 %v522, %v522
  %v555 = vpack.c.b16 %v523, %v523
  %v556 = vpack.c.b16 %v524, %v524
  %v557 = vpack.c.b16 %v525, %v525
  %v558 = vpack.c.b16 %v526, %v526
  %v559 = vpack.c.b16 %v527, %v527
  %v560 = vpack.c.b16 %v528, %v528
  %v561 = vpack.c.b16 %v529, %v529
  %v562 = vpack.c.b16 %v530, %v530
  %v563 = vpack.c.b16 %v531, %v531
  %v564 = vpack.c.b16 %v532, %v532
  %v565 = vpack.c.b16 %v533, %v533
  %v566 = vpack.c.b16 %v534, %v534
  %v567 = vpack.c.b16 %v535, %v535
  %vm600 = vcmask 257024
  %601 = vst.msk [vmem:[%s3] sm:$0xf] %vm600, %v536
  %602 = vst.msk [vmem:[%s3 + $0x4] sm:$0xf] %vm600, %v537
  %603 = vst.msk [vmem:[%s3 + $0x8] sm:$0xf] %vm600, %v538
  %604 = vst.msk [vmem:[%s3 + $0xc] sm:$0xf] %vm600, %v539
  %605 = vst.msk [vmem:[%s3 + $0x10] sm:$0xf] %vm600, %v540
  %606 = vst.msk [vmem:[%s3 + $0x14] sm:$0xf] %vm600, %v541
  %607 = vst.msk [vmem:[%s3 + $0x18] sm:$0xf] %vm600, %v542
  %608 = vst.msk [vmem:[%s3 + $0x1c] sm:$0xf] %vm600, %v543
  %609 = vst.msk [vmem:[%s3 + $0x20] sm:$0xf] %vm600, %v544
  %610 = vst.msk [vmem:[%s3 + $0x24] sm:$0xf] %vm600, %v545
  %611 = vst.msk [vmem:[%s3 + $0x28] sm:$0xf] %vm600, %v546
  %612 = vst.msk [vmem:[%s3 + $0x2c] sm:$0xf] %vm600, %v547
  %613 = vst.msk [vmem:[%s3 + $0x30] sm:$0xf] %vm600, %v548
  %614 = vst.msk [vmem:[%s3 + $0x34] sm:$0xf] %vm600, %v549
  %615 = vst.msk [vmem:[%s3 + $0x38] sm:$0xf] %vm600, %v550
  %616 = vst.msk [vmem:[%s3 + $0x3c] sm:$0xf] %vm600, %v551
  %617 = vst.msk [vmem:[%s3 + $0x40] sm:$0xf] %vm600, %v552
  %618 = vst.msk [vmem:[%s3 + $0x44] sm:$0xf] %vm600, %v553
  %619 = vst.msk [vmem:[%s3 + $0x48] sm:$0xf] %vm600, %v554
  %620 = vst.msk [vmem:[%s3 + $0x4c] sm:$0xf] %vm600, %v555
  %621 = vst.msk [vmem:[%s3 + $0x50] sm:$0xf] %vm600, %v556
  %622 = vst.msk [vmem:[%s3 + $0x54] sm:$0xf] %vm600, %v557
  %623 = vst.msk [vmem:[%s3 + $0x58] sm:$0xf] %vm600, %v558
  %624 = vst.msk [vmem:[%s3 + $0x5c] sm:$0xf] %vm600, %v559
  %625 = vst.msk [vmem:[%s3 + $0x60] sm:$0xf] %vm600, %v560
  %626 = vst.msk [vmem:[%s3 + $0x64] sm:$0xf] %vm600, %v561
  %627 = vst.msk [vmem:[%s3 + $0x68] sm:$0xf] %vm600, %v562
  %628 = vst.msk [vmem:[%s3 + $0x6c] sm:$0xf] %vm600, %v563
  %629 = vst.msk [vmem:[%s3 + $0x70] sm:$0xf] %vm600, %v564
  %630 = vst.msk [vmem:[%s3 + $0x74] sm:$0xf] %vm600, %v565
  %631 = vst.msk [vmem:[%s3 + $0x78] sm:$0xf] %vm600, %v566
  %632 = vst.msk [vmem:[%s3 + $0x7c] sm:$0xf] %vm600, %v567
  // Predicated region
  $region14: #{_lambda_.9} parent=0 // pred_check
    _
  $region15: #{_lambda_.9} parent=0 // pred_check_branch
    %634 = sbr.rel (0) target = $region17
  $region16: #{_lambda_.9} parent=0 // pred_region
    _
  $region17: #{_lambda_.9} parent=0 // pred_fallthru
    _
  // Predicated region
  $region18: #{_lambda_.9} parent=0 // pred_check
    _
  $region19: #{_lambda_.9} parent=0 // pred_check_branch
    %636 = sbr.rel (0) target = $region21
  $region20: #{_lambda_.9} parent=0 // pred_region
    _
  $region21: #{_lambda_.9} parent=0 // pred_fallthru
    _

// kernel: _lambda_.10
$region0: #{_lambda_.10}
  #allocation0 [shape = 'u32[]', space=smem, size = 0x4, offset = 0x4, fixed_abs, tag = 'smem constant byte address 0x4 - core index']
  #allocation1 [shape = 'u32[144,128]{1,0:T(1,128)}', space=vmem, size = 0x12000, scoped, tag = 'internal scratch']
  %s0 = inlined_call_operand.vmem [shape: bf16[64,512], index: 0, kind: input, shape index: {}]
  %s1 = inlined_call_operand.vmem [shape: bf16[512,64], index: 1, kind: input, shape index: {}]
  %s2 = inlined_call_operand.vmem [shape: f32[1,64], index: 2, kind: input, shape index: {}]
  %s3 = inlined_call_operand.vmem [shape: bf16[64,64], index: 3, kind: output, shape index: {}]
  %s4 = sld [smem:[#allocation0]]
  $region22: #{_lambda_.10} parent=0
    _
  %s6 = ssub.s32 1, %s4
  %s7 = scalar_select 0, %s6, %s4
  // Predicated region
  $region2: #{_lambda_.10} parent=0 // pred_check
    _
  $region3: #{_lambda_.10} parent=0 // pred_check_branch
    %9 = sbr.rel (0) target = $region5
  $region4: #{_lambda_.10} parent=0 // pred_region
    _
  $region5: #{_lambda_.10} parent=0 // pred_fallthru
    _
  // Predicated region
  $region6: #{_lambda_.10} parent=0 // pred_check
    _
  $region7: #{_lambda_.10} parent=0 // pred_check_branch
    %11 = sbr.rel (0) target = $region9
  $region8: #{_lambda_.10} parent=0 // pred_region
    _
  $region9: #{_lambda_.10} parent=0 // pred_fallthru
    _
  // Predicated region
  $region10: #{_lambda_.10} parent=0 // pred_check
    _
  $region11: #{_lambda_.10} parent=0 // pred_check_branch
    %13 = sbr.rel (0) target = $region13
  $region12: #{_lambda_.10} parent=0 // pred_region
    _
  $region13: #{_lambda_.10} parent=0 // pred_fallthru
    _
  %v15 = vld [vmem:[%s0] sm:$0xff]
  %v16 = vld [vmem:[%s0 + $0x8] sm:$0xff]
  %v17 = vld [vmem:[%s0 + $0x10] sm:$0xff]
  %v18 = vld [vmem:[%s0 + $0x18] sm:$0xff]
  %v19 = vld [vmem:[%s0 + $0x20] sm:$0xff]
  %v20 = vld [vmem:[%s0 + $0x28] sm:$0xff]
  %v21 = vld [vmem:[%s0 + $0x30] sm:$0xff]
  %v22 = vld [vmem:[%s0 + $0x38] sm:$0xff]
  %v23 = vld [vmem:[%s0 + $0x40] sm:$0xff]
  %v24 = vld [vmem:[%s0 + $0x48] sm:$0xff]
  %v25 = vld [vmem:[%s0 + $0x50] sm:$0xff]
  %v26 = vld [vmem:[%s0 + $0x58] sm:$0xff]
  %v27 = vld [vmem:[%s0 + $0x60] sm:$0xff]
  %v28 = vld [vmem:[%s0 + $0x68] sm:$0xff]
  %v29 = vld [vmem:[%s0 + $0x70] sm:$0xff]
  %v30 = vld [vmem:[%s0 + $0x78] sm:$0xff]
  %v31 = vld [vmem:[%s1] sm:$0xf]
  %v32 = vld [vmem:[%s1 + $0x4] sm:$0xf]
  %v33 = vld [vmem:[%s1 + $0x8] sm:$0xf]
  %v34 = vld [vmem:[%s1 + $0xc] sm:$0xf]
  %v35 = vld [vmem:[%s1 + $0x10] sm:$0xf]
  %v36 = vld [vmem:[%s1 + $0x14] sm:$0xf]
  %v37 = vld [vmem:[%s1 + $0x18] sm:$0xf]
  %v38 = vld [vmem:[%s1 + $0x1c] sm:$0xf]
  %v39 = vld [vmem:[%s1 + $0x20] sm:$0xf]
  %v40 = vld [vmem:[%s1 + $0x24] sm:$0xf]
  %v41 = vld [vmem:[%s1 + $0x28] sm:$0xf]
  %v42 = vld [vmem:[%s1 + $0x2c] sm:$0xf]
  %v43 = vld [vmem:[%s1 + $0x30] sm:$0xf]
  %v44 = vld [vmem:[%s1 + $0x34] sm:$0xf]
  %v45 = vld [vmem:[%s1 + $0x38] sm:$0xf]
  %v46 = vld [vmem:[%s1 + $0x3c] sm:$0xf]
  %v47 = vld [vmem:[%s1 + $0x40] sm:$0xf]
  %v48 = vld [vmem:[%s1 + $0x44] sm:$0xf]
  %v49 = vld [vmem:[%s1 + $0x48] sm:$0xf]
  %v50 = vld [vmem:[%s1 + $0x4c] sm:$0xf]
  %v51 = vld [vmem:[%s1 + $0x50] sm:$0xf]
  %v52 = vld [vmem:[%s1 + $0x54] sm:$0xf]
  %v53 = vld [vmem:[%s1 + $0x58] sm:$0xf]
  %v54 = vld [vmem:[%s1 + $0x5c] sm:$0xf]
  %v55 = vld [vmem:[%s1 + $0x60] sm:$0xf]
  %v56 = vld [vmem:[%s1 + $0x64] sm:$0xf]
  %v57 = vld [vmem:[%s1 + $0x68] sm:$0xf]
  %v58 = vld [vmem:[%s1 + $0x6c] sm:$0xf]
  %v59 = vld [vmem:[%s1 + $0x70] sm:$0xf]
  %v60 = vld [vmem:[%s1 + $0x74] sm:$0xf]
  %v61 = vld [vmem:[%s1 + $0x78] sm:$0xf]
  %v62 = vld [vmem:[%s1 + $0x7c] sm:$0xf]
  %v63 = vld [vmem:[%s1 + $0x80] sm:$0xf]
  %v64 = vld [vmem:[%s1 + $0x84] sm:$0xf]
  %v65 = vld [vmem:[%s1 + $0x88] sm:$0xf]
  %v66 = vld [vmem:[%s1 + $0x8c] sm:$0xf]
  %v67 = vld [vmem:[%s1 + $0x90] sm:$0xf]
  %v68 = vld [vmem:[%s1 + $0x94] sm:$0xf]
  %v69 = vld [vmem:[%s1 + $0x98] sm:$0xf]
  %v70 = vld [vmem:[%s1 + $0x9c] sm:$0xf]
  %v71 = vld [vmem:[%s1 + $0xa0] sm:$0xf]
  %v72 = vld [vmem:[%s1 + $0xa4] sm:$0xf]
  %v73 = vld [vmem:[%s1 + $0xa8] sm:$0xf]
  %v74 = vld [vmem:[%s1 + $0xac] sm:$0xf]
  %v75 = vld [vmem:[%s1 + $0xb0] sm:$0xf]
  %v76 = vld [vmem:[%s1 + $0xb4] sm:$0xf]
  %v77 = vld [vmem:[%s1 + $0xb8] sm:$0xf]
  %v78 = vld [vmem:[%s1 + $0xbc] sm:$0xf]
  %v79 = vld [vmem:[%s1 + $0xc0] sm:$0xf]
  %v80 = vld [vmem:[%s1 + $0xc4] sm:$0xf]
  %v81 = vld [vmem:[%s1 + $0xc8] sm:$0xf]
  %v82 = vld [vmem:[%s1 + $0xcc] sm:$0xf]
  %v83 = vld [vmem:[%s1 + $0xd0] sm:$0xf]
  %v84 = vld [vmem:[%s1 + $0xd4] sm:$0xf]
  %v85 = vld [vmem:[%s1 + $0xd8] sm:$0xf]
  %v86 = vld [vmem:[%s1 + $0xdc] sm:$0xf]
  %v87 = vld [vmem:[%s1 + $0xe0] sm:$0xf]
  %v88 = vld [vmem:[%s1 + $0xe4] sm:$0xf]
  %v89 = vld [vmem:[%s1 + $0xe8] sm:$0xf]
  %v90 = vld [vmem:[%s1 + $0xec] sm:$0xf]
  %v91 = vld [vmem:[%s1 + $0xf0] sm:$0xf]
  %v92 = vld [vmem:[%s1 + $0xf4] sm:$0xf]
  %v93 = vld [vmem:[%s1 + $0xf8] sm:$0xf]
  %v94 = vld [vmem:[%s1 + $0xfc] sm:$0xf]
  %v95 = vld [vmem:[%s2] sm:$0x1]
  %v97 = vlaneseq
  %v98 = vshrl.u32 %v97, 7
  %v99 = vsub.s32 0, %v98
  %v100 = vrot.slane %v95, %v99
  %v118 = vunpack.c.l.b16 %v15
  %v119 = vunpack.c.h.b16 %v15
  %v120 = vunpack.c.l.b16 %v16
  %v121 = vunpack.c.h.b16 %v16
  %v122 = vunpack.c.l.b16 %v17
  %v123 = vunpack.c.h.b16 %v17
  %v124 = vunpack.c.l.b16 %v18
  %v125 = vunpack.c.h.b16 %v18
  %v126 = vunpack.c.l.b16 %v19
  %v127 = vunpack.c.h.b16 %v19
  %v128 = vunpack.c.l.b16 %v20
  %v129 = vunpack.c.h.b16 %v20
  %v130 = vunpack.c.l.b16 %v21
  %v131 = vunpack.c.h.b16 %v21
  %v132 = vunpack.c.l.b16 %v22
  %v133 = vunpack.c.h.b16 %v22
  %v134 = vunpack.c.l.b16 %v23
  %v135 = vunpack.c.h.b16 %v23
  %v136 = vunpack.c.l.b16 %v24
  %v137 = vunpack.c.h.b16 %v24
  %v138 = vunpack.c.l.b16 %v25
  %v139 = vunpack.c.h.b16 %v25
  %v140 = vunpack.c.l.b16 %v26
  %v141 = vunpack.c.h.b16 %v26
  %v142 = vunpack.c.l.b16 %v27
  %v143 = vunpack.c.h.b16 %v27
  %v144 = vunpack.c.l.b16 %v28
  %v145 = vunpack.c.h.b16 %v28
  %v146 = vunpack.c.l.b16 %v29
  %v147 = vunpack.c.h.b16 %v29
  %v148 = vunpack.c.l.b16 %v30
  %v149 = vunpack.c.h.b16 %v30
  %v150 = vpack.c.b16 %v122, %v118
  %v151 = vpack.c.b16 %v123, %v119
  %v152 = vpack.c.b16 %v124, %v120
  %v153 = vpack.c.b16 %v125, %v121
  %v154 = vpack.c.b16 %v130, %v126
  %v155 = vpack.c.b16 %v131, %v127
  %v156 = vpack.c.b16 %v132, %v128
  %v157 = vpack.c.b16 %v133, %v129
  %v158 = vpack.c.b16 %v138, %v134
  %v159 = vpack.c.b16 %v139, %v135
  %v160 = vpack.c.b16 %v140, %v136
  %v161 = vpack.c.b16 %v141, %v137
  %v162 = vpack.c.b16 %v146, %v142
  %v163 = vpack.c.b16 %v147, %v143
  %v164 = vpack.c.b16 %v148, %v144
  %v165 = vpack.c.b16 %v149, %v145
  %v246 = vunpack.c.l.b16 %v31
  %v247 = vunpack.c.l.b16 %v32
  %v248 = vunpack.c.l.b16 %v33
  %v249 = vunpack.c.l.b16 %v34
  %v250 = vunpack.c.l.b16 %v35
  %v251 = vunpack.c.l.b16 %v36
  %v252 = vunpack.c.l.b16 %v37
  %v253 = vunpack.c.l.b16 %v38
  %v254 = vunpack.c.l.b16 %v39
  %v255 = vunpack.c.l.b16 %v40
  %v256 = vunpack.c.l.b16 %v41
  %v257 = vunpack.c.l.b16 %v42
  %v258 = vunpack.c.l.b16 %v43
  %v259 = vunpack.c.l.b16 %v44
  %v260 = vunpack.c.l.b16 %v45
  %v261 = vunpack.c.l.b16 %v46
  %v262 = vunpack.c.l.b16 %v47
  %v263 = vunpack.c.l.b16 %v48
  %v264 = vunpack.c.l.b16 %v49
  %v265 = vunpack.c.l.b16 %v50
  %v266 = vunpack.c.l.b16 %v51
  %v267 = vunpack.c.l.b16 %v52
  %v268 = vunpack.c.l.b16 %v53
  %v269 = vunpack.c.l.b16 %v54
  %v270 = vunpack.c.l.b16 %v55
  %v271 = vunpack.c.l.b16 %v56
  %v272 = vunpack.c.l.b16 %v57
  %v273 = vunpack.c.l.b16 %v58
  %v274 = vunpack.c.l.b16 %v59
  %v275 = vunpack.c.l.b16 %v60
  %v276 = vunpack.c.l.b16 %v61
  %v277 = vunpack.c.l.b16 %v62
  %v278 = vunpack.c.l.b16 %v63
  %v279 = vunpack.c.l.b16 %v64
  %v280 = vunpack.c.l.b16 %v65
  %v281 = vunpack.c.l.b16 %v66
  %v282 = vunpack.c.l.b16 %v67
  %v283 = vunpack.c.l.b16 %v68
  %v284 = vunpack.c.l.b16 %v69
  %v285 = vunpack.c.l.b16 %v70
  %v286 = vunpack.c.l.b16 %v71
  %v287 = vunpack.c.l.b16 %v72
  %v288 = vunpack.c.l.b16 %v73
  %v289 = vunpack.c.l.b16 %v74
  %v290 = vunpack.c.l.b16 %v75
  %v291 = vunpack.c.l.b16 %v76
  %v292 = vunpack.c.l.b16 %v77
  %v293 = vunpack.c.l.b16 %v78
  %v294 = vunpack.c.l.b16 %v79
  %v295 = vunpack.c.l.b16 %v80
  %v296 = vunpack.c.l.b16 %v81
  %v297 = vunpack.c.l.b16 %v82
  %v298 = vunpack.c.l.b16 %v83
  %v299 = vunpack.c.l.b16 %v84
  %v300 = vunpack.c.l.b16 %v85
  %v301 = vunpack.c.l.b16 %v86
  %v302 = vunpack.c.l.b16 %v87
  %v303 = vunpack.c.l.b16 %v88
  %v304 = vunpack.c.l.b16 %v89
  %v305 = vunpack.c.l.b16 %v90
  %v306 = vunpack.c.l.b16 %v91
  %v307 = vunpack.c.l.b16 %v92
  %v308 = vunpack.c.l.b16 %v93
  %v309 = vunpack.c.l.b16 %v94
  %v310 = vpack.c.b16 %v247, %v246
  %v311 = vpack.c.b16 %v249, %v248
  %v312 = vpack.c.b16 %v251, %v250
  %v313 = vpack.c.b16 %v253, %v252
  %v314 = vpack.c.b16 %v255, %v254
  %v315 = vpack.c.b16 %v257, %v256
  %v316 = vpack.c.b16 %v259, %v258
  %v317 = vpack.c.b16 %v261, %v260
  %v318 = vpack.c.b16 %v263, %v262
  %v319 = vpack.c.b16 %v265, %v264
  %v320 = vpack.c.b16 %v267, %v266
  %v321 = vpack.c.b16 %v269, %v268
  %v322 = vpack.c.b16 %v271, %v270
  %v323 = vpack.c.b16 %v273, %v272
  %v324 = vpack.c.b16 %v275, %v274
  %v325 = vpack.c.b16 %v277, %v276
  %v326 = vpack.c.b16 %v279, %v278
  %v327 = vpack.c.b16 %v281, %v280
  %v328 = vpack.c.b16 %v283, %v282
  %v329 = vpack.c.b16 %v285, %v284
  %v330 = vpack.c.b16 %v287, %v286
  %v331 = vpack.c.b16 %v289, %v288
  %v332 = vpack.c.b16 %v291, %v290
  %v333 = vpack.c.b16 %v293, %v292
  %v334 = vpack.c.b16 %v295, %v294
  %v335 = vpack.c.b16 %v297, %v296
  %v336 = vpack.c.b16 %v299, %v298
  %v337 = vpack.c.b16 %v301, %v300
  %v338 = vpack.c.b16 %v303, %v302
  %v339 = vpack.c.b16 %v305, %v304
  %v340 = vpack.c.b16 %v307, %v306
  %v341 = vpack.c.b16 %v309, %v308
  %374 = vmatprep.subr.bf16.mxu0 0
  %375 = vmatpush1.bf16.msra.mxu0 %v310
  %376 = vmatprep.subr.bf16.mxu0 0
  %377 = vmatpush1.bf16.msra.mxu0 %v311
  %378 = vmatprep.subr.bf16.mxu0 0
  %379 = vmatpush1.bf16.msra.mxu0 %v312
  %380 = vmatprep.subr.bf16.mxu0 0
  %381 = vmatpush1.bf16.msra.mxu0 %v313
  %382 = vmatprep.subr.bf16.mxu0 0
  %383 = vmatpush1.bf16.msra.mxu0 %v314
  %384 = vmatprep.subr.bf16.mxu0 0
  %385 = vmatpush1.bf16.msra.mxu0 %v315
  %386 = vmatprep.subr.bf16.mxu0 0
  %387 = vmatpush1.bf16.msra.mxu0 %v316
  %388 = vmatprep.subr.bf16.mxu0 0
  %389 = vmatpush1.bf16.msra.mxu0 %v317
  %390 = vmatprep.subr.bf16.mxu0 0
  %391 = vmatpush1.bf16.msra.mxu0 %v318
  %392 = vmatprep.subr.bf16.mxu0 0
  %393 = vmatpush1.bf16.msra.mxu0 %v319
  %394 = vmatprep.subr.bf16.mxu0 0
  %395 = vmatpush1.bf16.msra.mxu0 %v320
  %396 = vmatprep.subr.bf16.mxu0 0
  %397 = vmatpush1.bf16.msra.mxu0 %v321
  %398 = vmatprep.subr.bf16.mxu0 0
  %399 = vmatpush1.bf16.msra.mxu0 %v322
  %400 = vmatprep.subr.bf16.mxu0 0
  %401 = vmatpush1.bf16.msra.mxu0 %v323
  %402 = vmatprep.subr.bf16.mxu0 0
  %403 = vmatpush1.bf16.msra.mxu0 %v324
  %404 = vmatprep.subr.bf16.mxu0 0
  %405 = vmatpush1.bf16.msra.mxu0 %v325
  %406 = vmatprep.mubr.bf16.mxu0 %v151
  %407 = vmatmul.mubr.bf16.gmra.mrb[0].mxu0 %v150
  %v408 = vpop.f32.mrb[0].mxu0
  %v409 = vadd.f32 %v100, %v408
  %v410 = vpop.f32.mrb[0].mxu0
  %v411 = vpop.f32.mrb[0].mxu0
  %v412 = vadd.f32 %v100, %v411
  %v413 = vpop.f32.mrb[0].mxu0
  %414 = vmatprep.mubr.bf16.mxu0 %v155
  %415 = vmatmul.mubr.bf16.gmra.mrb[0].mxu0 %v154
  %v416 = vpop.f32.mrb[0].mxu0
  %v417 = vadd.f32 %v100, %v416
  %v418 = vpop.f32.mrb[0].mxu0
  %v419 = vpop.f32.mrb[0].mxu0
  %v420 = vadd.f32 %v100, %v419
  %v421 = vpop.f32.mrb[0].mxu0
  %422 = vmatprep.mubr.bf16.mxu0 %v159
  %423 = vmatmul.mubr.bf16.gmra.mrb[0].mxu0 %v158
  %v424 = vpop.f32.mrb[0].mxu0
  %v425 = vadd.f32 %v100, %v424
  %v426 = vpop.f32.mrb[0].mxu0
  %v427 = vpop.f32.mrb[0].mxu0
  %v428 = vadd.f32 %v100, %v427
  %v429 = vpop.f32.mrb[0].mxu0
  %430 = vmatprep.mubr.bf16.mxu0 %v163
  %431 = vmatmul.mubr.bf16.gmra.mrb[0].mxu0 %v162
  %v432 = vpop.f32.mrb[0].mxu0
  %v433 = vadd.f32 %v100, %v432
  %v434 = vpop.f32.mrb[0].mxu0
  %v435 = vpop.f32.mrb[0].mxu0
  %v436 = vadd.f32 %v100, %v435
  %v437 = vpop.f32.mrb[0].mxu0
  %438 = vdwg.mxu0
  %439 = vmatprep.subr.bf16.mxu0 0
  %440 = vmatpush1.bf16.msra.mxu0 %v326
  %441 = vmatprep.subr.bf16.mxu0 0
  %442 = vmatpush1.bf16.msra.mxu0 %v327
  %443 = vmatprep.subr.bf16.mxu0 0
  %444 = vmatpush1.bf16.msra.mxu0 %v328
  %445 = vmatprep.subr.bf16.mxu0 0
  %446 = vmatpush1.bf16.msra.mxu0 %v329
  %447 = vmatprep.subr.bf16.mxu0 0
  %448 = vmatpush1.bf16.msra.mxu0 %v330
  %449 = vmatprep.subr.bf16.mxu0 0
  %450 = vmatpush1.bf16.msra.mxu0 %v331
  %451 = vmatprep.subr.bf16.mxu0 0
  %452 = vmatpush1.bf16.msra.mxu0 %v332
  %453 = vmatprep.subr.bf16.mxu0 0
  %454 = vmatpush1.bf16.msra.mxu0 %v333
  %455 = vmatprep.subr.bf16.mxu0 0
  %456 = vmatpush1.bf16.msra.mxu0 %v334
  %457 = vmatprep.subr.bf16.mxu0 0
  %458 = vmatpush1.bf16.msra.mxu0 %v335
  %459 = vmatprep.subr.bf16.mxu0 0
  %460 = vmatpush1.bf16.msra.mxu0 %v336
  %461 = vmatprep.subr.bf16.mxu0 0
  %462 = vmatpush1.bf16.msra.mxu0 %v337
  %463 = vmatprep.subr.bf16.mxu0 0
  %464 = vmatpush1.bf16.msra.mxu0 %v338
  %465 = vmatprep.subr.bf16.mxu0 0
  %466 = vmatpush1.bf16.msra.mxu0 %v339
  %467 = vmatprep.subr.bf16.mxu0 0
  %468 = vmatpush1.bf16.msra.mxu0 %v340
  %469 = vmatprep.subr.bf16.mxu0 0
  %470 = vmatpush1.bf16.msra.mxu0 %v341
  %471 = vmatprep.mubr.bf16.mxu0 %v153
  %472 = vmatmul.mubr.bf16.gmra.mrb[0].mxu0 %v152
  %v473 = vpop.f32.mrb[0].mxu0
  %v474 = vadd.f32 %v409, %v473
  %v475 = vpop.f32.mrb[0].mxu0
  %v476 = vpop.f32.mrb[0].mxu0
  %v477 = vadd.f32 %v412, %v476
  %v478 = vpop.f32.mrb[0].mxu0
  %479 = vmatprep.mubr.bf16.mxu0 %v157
  %480 = vmatmul.mubr.bf16.gmra.mrb[0].mxu0 %v156
  %v481 = vpop.f32.mrb[0].mxu0
  %v482 = vadd.f32 %v417, %v481
  %v483 = vpop.f32.mrb[0].mxu0
  %v484 = vpop.f32.mrb[0].mxu0
  %v485 = vadd.f32 %v420, %v484
  %v486 = vpop.f32.mrb[0].mxu0
  %487 = vmatprep.mubr.bf16.mxu0 %v161
  %488 = vmatmul.mubr.bf16.gmra.mrb[0].mxu0 %v160
  %v489 = vpop.f32.mrb[0].mxu0
  %v490 = vadd.f32 %v425, %v489
  %v491 = vpop.f32.mrb[0].mxu0
  %v492 = vpop.f32.mrb[0].mxu0
  %v493 = vadd.f32 %v428, %v492
  %v494 = vpop.f32.mrb[0].mxu0
  %495 = vmatprep.mubr.bf16.mxu0 %v165
  %496 = vmatmul.mubr.bf16.gmra.mrb[0].mxu0 %v164
  %v497 = vpop.f32.mrb[0].mxu0
  %v498 = vadd.f32 %v433, %v497
  %v499 = vpop.f32.mrb[0].mxu0
  %v500 = vpop.f32.mrb[0].mxu0
  %v501 = vadd.f32 %v436, %v500
  %v502 = vpop.f32.mrb[0].mxu0
  %503 = vdwg.mxu0
  %vm504 = vcmp.ge.f32.partialorder %v474, 0.0
  %vm505 = vcmp.ge.f32.partialorder %v477, 0.0
  %vm506 = vcmp.ge.f32.partialorder %v482, 0.0
  %vm507 = vcmp.ge.f32.partialorder %v485, 0.0
  %vm508 = vcmp.ge.f32.partialorder %v490, 0.0
  %vm509 = vcmp.ge.f32.partialorder %v493, 0.0
  %vm510 = vcmp.ge.f32.partialorder %v498, 0.0
  %vm511 = vcmp.ge.f32.partialorder %v501, 0.0
  %v512 = vmul.f32 %v474, 0.2
  %v513 = vmul.f32 %v477, 0.2
  %v514 = vmul.f32 %v482, 0.2
  %v515 = vmul.f32 %v485, 0.2
  %v516 = vmul.f32 %v490, 0.2
  %v517 = vmul.f32 %v493, 0.2
  %v518 = vmul.f32 %v498, 0.2
  %v519 = vmul.f32 %v501, 0.2
  %v520 = vsel %vm504, %v474, %v512
  %v521 = vsel %vm505, %v477, %v513
  %v522 = vsel %vm506, %v482, %v514
  %v523 = vsel %vm507, %v485, %v515
  %v524 = vsel %vm508, %v490, %v516
  %v525 = vsel %vm509, %v493, %v517
  %v526 = vsel %vm510, %v498, %v518
  %v527 = vsel %vm511, %v501, %v519
  %v528 = vpack.c.bf16 %v521, %v520
  %v529 = vpack.c.bf16 %v523, %v522
  %v530 = vpack.c.bf16 %v525, %v524
  %v531 = vpack.c.bf16 %v527, %v526
  %v536 = vunpack.c.l.b16 %v528
  %v537 = vunpack.c.h.b16 %v528
  %v538 = vunpack.c.l.b16 %v529
  %v539 = vunpack.c.h.b16 %v529
  %v540 = vunpack.c.l.b16 %v530
  %v541 = vunpack.c.h.b16 %v530
  %v542 = vunpack.c.l.b16 %v531
  %v543 = vunpack.c.h.b16 %v531
  %v544 = vpack.c.b16 %v536, %v536
  %v545 = vpack.c.b16 %v537, %v537
  %v546 = vpack.c.b16 %v538, %v538
  %v547 = vpack.c.b16 %v539, %v539
  %v548 = vpack.c.b16 %v540, %v540
  %v549 = vpack.c.b16 %v541, %v541
  %v550 = vpack.c.b16 %v542, %v542
  %v551 = vpack.c.b16 %v543, %v543
  %vm560 = vcmask 519168
  %561 = vst.msk [vmem:[%s3] sm:$0xf] %vm560, %v544
  %562 = vst.msk [vmem:[%s3 + $0x4] sm:$0xf] %vm560, %v545
  %563 = vst.msk [vmem:[%s3 + $0x8] sm:$0xf] %vm560, %v546
  %564 = vst.msk [vmem:[%s3 + $0xc] sm:$0xf] %vm560, %v547
  %565 = vst.msk [vmem:[%s3 + $0x10] sm:$0xf] %vm560, %v548
  %566 = vst.msk [vmem:[%s3 + $0x14] sm:$0xf] %vm560, %v549
  %567 = vst.msk [vmem:[%s3 + $0x18] sm:$0xf] %vm560, %v550
  %568 = vst.msk [vmem:[%s3 + $0x1c] sm:$0xf] %vm560, %v551
  // Predicated region
  $region14: #{_lambda_.10} parent=0 // pred_check
    _
  $region15: #{_lambda_.10} parent=0 // pred_check_branch
    %570 = sbr.rel (0) target = $region17
  $region16: #{_lambda_.10} parent=0 // pred_region
    _
  $region17: #{_lambda_.10} parent=0 // pred_fallthru
    _
  // Predicated region
  $region18: #{_lambda_.10} parent=0 // pred_check
    _
  $region19: #{_lambda_.10} parent=0 // pred_check_branch
    %572 = sbr.rel (0) target = $region21
  $region20: #{_lambda_.10} parent=0 // pred_region
    _
  $region21: #{_lambda_.10} parent=0 // pred_fallthru
    _

// kernel: _lambda_.11
$region0: #{_lambda_.11}
  #allocation0 [shape = 'u32[]', space=smem, size = 0x4, offset = 0x4, fixed_abs, tag = 'smem constant byte address 0x4 - core index']
  #allocation1 [shape = 'u32[144,128]{1,0:T(1,128)}', space=vmem, size = 0x12000, scoped, tag = 'internal scratch']
  %s0 = inlined_call_operand.vmem [shape: bf16[40,1024], index: 0, kind: input, shape index: {}]
  %s1 = inlined_call_operand.vmem [shape: bf16[1024,128], index: 1, kind: input, shape index: {}]
  %s2 = inlined_call_operand.vmem [shape: f32[1,128], index: 2, kind: input, shape index: {}]
  %s3 = inlined_call_operand.hbm [shape: f32[1,128], index: 3, kind: output, shape index: {}]
  %s4 = sld [smem:[#allocation0]]
  $region26: #{_lambda_.11} parent=0
    _
  %s6 = ssub.s32 1, %s4
  %s7 = scalar_select 0, %s6, %s4
  $region1: #{_lambda_.11} parent=0
    #allocation2 [shape = 'u8[512]{0}', space=vmem, size = 0x400, scoped, tag = 'output window, operand 0, single buffered']
    #allocation3 [shape = 's32[1]{0}', space=sflag, size = 0x4, scoped, tag = 'scoped memory for _lambda_.11']
    %8 = vsyncpa [#allocation3], 0
    // Predicated region
    $region2: #{_lambda_.11} parent=1 // pred_check
      _
    $region3: #{_lambda_.11} parent=1 // pred_check_branch
      %10 = sbr.rel (0) target = $region5
    $region4: #{_lambda_.11} parent=1 // pred_region
      _
    $region5: #{_lambda_.11} parent=1 // pred_fallthru
      _
    // Predicated region
    $region6: #{_lambda_.11} parent=1 // pred_check
      _
    $region7: #{_lambda_.11} parent=1 // pred_check_branch
      %12 = sbr.rel (0) target = $region9
    $region8: #{_lambda_.11} parent=1 // pred_region
      _
    $region9: #{_lambda_.11} parent=1 // pred_fallthru
      _
    // Predicated region
    $region10: #{_lambda_.11} parent=1 // pred_check
      _
    $region11: #{_lambda_.11} parent=1 // pred_check_branch
      %14 = sbr.rel (0) target = $region13
    $region12: #{_lambda_.11} parent=1 // pred_region
      _
    $region13: #{_lambda_.11} parent=1 // pred_fallthru
      _
    %p16 = scmp.eq.s32.totalorder 0, 0
    // Predicated region
    $region14: #{_lambda_.11} parent=1 // pred_check
      %p17 = pneg %p16
    $region15: #{_lambda_.11} parent=1 // pred_check_branch
      %19 = sbr.rel (%p17) target = $region17
    $region16: #{_lambda_.11} parent=1 // pred_region
      %20 = vst [vmem:[#allocation2] sm:$0x1] 0.0
    $region17: #{_lambda_.11} parent=1 // pred_fallthru
      _
    %v21 = vld [vmem:[%s0] sm:$0xff]
    %v22 = vld [vmem:[%s0 + $0x8] sm:$0xff]
    %v23 = vld [vmem:[%s0 + $0x10] sm:$0xff]
    %v24 = vld [vmem:[%s0 + $0x18] sm:$0xff]
    %v25 = vld [vmem:[%s0 + $0x20] sm:$0xff]
    %v26 = vld [vmem:[%s0 + $0x28] sm:$0xff]
    %v27 = vld [vmem:[%s0 + $0x30] sm:$0xff]
    %v28 = vld [vmem:[%s0 + $0x38] sm:$0xff]
    %v29 = vld [vmem:[%s0 + $0x40] sm:$0xff]
    %v30 = vld [vmem:[%s0 + $0x48] sm:$0xff]
    %v31 = vld [vmem:[%s0 + $0x50] sm:$0xff]
    %v32 = vld [vmem:[%s0 + $0x58] sm:$0xff]
    %v33 = vld [vmem:[%s0 + $0x60] sm:$0xff]
    %v34 = vld [vmem:[%s0 + $0x68] sm:$0xff]
    %v35 = vld [vmem:[%s0 + $0x70] sm:$0xff]
    %v36 = vld [vmem:[%s0 + $0x78] sm:$0xff]
    %v37 = vld [vmem:[%s0 + $0x80] sm:$0xff]
    %v38 = vld [vmem:[%s0 + $0x88] sm:$0xff]
    %v39 = vld [vmem:[%s0 + $0x90] sm:$0xff]
    %v40 = vld [vmem:[%s0 + $0x98] sm:$0xff]
    %v41 = vld [vmem:[%s1] sm:$0xf]
    %v42 = vld [vmem:[%s1 + $0x4] sm:$0xf]
    %v43 = vld [vmem:[%s1 + $0x8] sm:$0xf]
    %v44 = vld [vmem:[%s1 + $0xc] sm:$0xf]
    %v45 = vld [vmem:[%s1 + $0x10] sm:$0xf]
    %v46 = vld [vmem:[%s1 + $0x14] sm:$0xf]
    %v47 = vld [vmem:[%s1 + $0x18] sm:$0xf]
    %v48 = vld [vmem:[%s1 + $0x1c] sm:$0xf]
    %v49 = vld [vmem:[%s1 + $0x20] sm:$0xf]
    %v50 = vld [vmem:[%s1 + $0x24] sm:$0xf]
    %v51 = vld [vmem:[%s1 + $0x28] sm:$0xf]
    %v52 = vld [vmem:[%s1 + $0x2c] sm:$0xf]
    %v53 = vld [vmem:[%s1 + $0x30] sm:$0xf]
    %v54 = vld [vmem:[%s1 + $0x34] sm:$0xf]
    %v55 = vld [vmem:[%s1 + $0x38] sm:$0xf]
    %v56 = vld [vmem:[%s1 + $0x3c] sm:$0xf]
    %v57 = vld [vmem:[%s1 + $0x40] sm:$0xf]
    %v58 = vld [vmem:[%s1 + $0x44] sm:$0xf]
    %v59 = vld [vmem:[%s1 + $0x48] sm:$0xf]
    %v60 = vld [vmem:[%s1 + $0x4c] sm:$0xf]
    %v61 = vld [vmem:[%s1 + $0x50] sm:$0xf]
    %v62 = vld [vmem:[%s1 + $0x54] sm:$0xf]
    %v63 = vld [vmem:[%s1 + $0x58] sm:$0xf]
    %v64 = vld [vmem:[%s1 + $0x5c] sm:$0xf]
    %v65 = vld [vmem:[%s1 + $0x60] sm:$0xf]
    %v66 = vld [vmem:[%s1 + $0x64] sm:$0xf]
    %v67 = vld [vmem:[%s1 + $0x68] sm:$0xf]
    %v68 = vld [vmem:[%s1 + $0x6c] sm:$0xf]
    %v69 = vld [vmem:[%s1 + $0x70] sm:$0xf]
    %v70 = vld [vmem:[%s1 + $0x74] sm:$0xf]
    %v71 = vld [vmem:[%s1 + $0x78] sm:$0xf]
    %v72 = vld [vmem:[%s1 + $0x7c] sm:$0xf]
    %v73 = vld [vmem:[%s1 + $0x80] sm:$0xf]
    %v74 = vld [vmem:[%s1 + $0x84] sm:$0xf]
    %v75 = vld [vmem:[%s1 + $0x88] sm:$0xf]
    %v76 = vld [vmem:[%s1 + $0x8c] sm:$0xf]
    %v77 = vld [vmem:[%s1 + $0x90] sm:$0xf]
    %v78 = vld [vmem:[%s1 + $0x94] sm:$0xf]
    %v79 = vld [vmem:[%s1 + $0x98] sm:$0xf]
    %v80 = vld [vmem:[%s1 + $0x9c] sm:$0xf]
    %v81 = vld [vmem:[%s1 + $0xa0] sm:$0xf]
    %v82 = vld [vmem:[%s1 + $0xa4] sm:$0xf]
    %v83 = vld [vmem:[%s1 + $0xa8] sm:$0xf]
    %v84 = vld [vmem:[%s1 + $0xac] sm:$0xf]
    %v85 = vld [vmem:[%s1 + $0xb0] sm:$0xf]
    %v86 = vld [vmem:[%s1 + $0xb4] sm:$0xf]
    %v87 = vld [vmem:[%s1 + $0xb8] sm:$0xf]
    %v88 = vld [vmem:[%s1 + $0xbc] sm:$0xf]
    %v89 = vld [vmem:[%s1 + $0xc0] sm:$0xf]
    %v90 = vld [vmem:[%s1 + $0xc4] sm:$0xf]
    %v91 = vld [vmem:[%s1 + $0xc8] sm:$0xf]
    %v92 = vld [vmem:[%s1 + $0xcc] sm:$0xf]
    %v93 = vld [vmem:[%s1 + $0xd0] sm:$0xf]
    %v94 = vld [vmem:[%s1 + $0xd4] sm:$0xf]
    %v95 = vld [vmem:[%s1 + $0xd8] sm:$0xf]
    %v96 = vld [vmem:[%s1 + $0xdc] sm:$0xf]
    %v97 = vld [vmem:[%s1 + $0xe0] sm:$0xf]
    %v98 = vld [vmem:[%s1 + $0xe4] sm:$0xf]
    %v99 = vld [vmem:[%s1 + $0xe8] sm:$0xf]
    %v100 = vld [vmem:[%s1 + $0xec] sm:$0xf]
    %v101 = vld [vmem:[%s1 + $0xf0] sm:$0xf]
    %v102 = vld [vmem:[%s1 + $0xf4] sm:$0xf]
    %v103 = vld [vmem:[%s1 + $0xf8] sm:$0xf]
    %v104 = vld [vmem:[%s1 + $0xfc] sm:$0xf]
    %v105 = vld [vmem:[%s1 + $0x100] sm:$0xf]
    %v106 = vld [vmem:[%s1 + $0x104] sm:$0xf]
    %v107 = vld [vmem:[%s1 + $0x108] sm:$0xf]
    %v108 = vld [vmem:[%s1 + $0x10c] sm:$0xf]
    %v109 = vld [vmem:[%s1 + $0x110] sm:$0xf]
    %v110 = vld [vmem:[%s1 + $0x114] sm:$0xf]
    %v111 = vld [vmem:[%s1 + $0x118] sm:$0xf]
    %v112 = vld [vmem:[%s1 + $0x11c] sm:$0xf]
    %v113 = vld [vmem:[%s1 + $0x120] sm:$0xf]
    %v114 = vld [vmem:[%s1 + $0x124] sm:$0xf]
    %v115 = vld [vmem:[%s1 + $0x128] sm:$0xf]
    %v116 = vld [vmem:[%s1 + $0x12c] sm:$0xf]
    %v117 = vld [vmem:[%s1 + $0x130] sm:$0xf]
    %v118 = vld [vmem:[%s1 + $0x134] sm:$0xf]
    %v119 = vld [vmem:[%s1 + $0x138] sm:$0xf]
    %v120 = vld [vmem:[%s1 + $0x13c] sm:$0xf]
    %v121 = vld [vmem:[%s1 + $0x140] sm:$0xf]
    %v122 = vld [vmem:[%s1 + $0x144] sm:$0xf]
    %v123 = vld [vmem:[%s1 + $0x148] sm:$0xf]
    %v124 = vld [vmem:[%s1 + $0x14c] sm:$0xf]
    %v125 = vld [vmem:[%s1 + $0x150] sm:$0xf]
    %v126 = vld [vmem:[%s1 + $0x154] sm:$0xf]
    %v127 = vld [vmem:[%s1 + $0x158] sm:$0xf]
    %v128 = vld [vmem:[%s1 + $0x15c] sm:$0xf]
    %v129 = vld [vmem:[%s1 + $0x160] sm:$0xf]
    %v130 = vld [vmem:[%s1 + $0x164] sm:$0xf]
    %v131 = vld [vmem:[%s1 + $0x168] sm:$0xf]
    %v132 = vld [vmem:[%s1 + $0x16c] sm:$0xf]
    %v133 = vld [vmem:[%s1 + $0x170] sm:$0xf]
    %v134 = vld [vmem:[%s1 + $0x174] sm:$0xf]
    %v135 = vld [vmem:[%s1 + $0x178] sm:$0xf]
    %v136 = vld [vmem:[%s1 + $0x17c] sm:$0xf]
    %v137 = vld [vmem:[%s1 + $0x180] sm:$0xf]
    %v138 = vld [vmem:[%s1 + $0x184] sm:$0xf]
    %v139 = vld [vmem:[%s1 + $0x188] sm:$0xf]
    %v140 = vld [vmem:[%s1 + $0x18c] sm:$0xf]
    %v141 = vld [vmem:[%s1 + $0x190] sm:$0xf]
    %v142 = vld [vmem:[%s1 + $0x194] sm:$0xf]
    %v143 = vld [vmem:[%s1 + $0x198] sm:$0xf]
    %v144 = vld [vmem:[%s1 + $0x19c] sm:$0xf]
    %v145 = vld [vmem:[%s1 + $0x1a0] sm:$0xf]
    %v146 = vld [vmem:[%s1 + $0x1a4] sm:$0xf]
    %v147 = vld [vmem:[%s1 + $0x1a8] sm:$0xf]
    %v148 = vld [vmem:[%s1 + $0x1ac] sm:$0xf]
    %v149 = vld [vmem:[%s1 + $0x1b0] sm:$0xf]
    %v150 = vld [vmem:[%s1 + $0x1b4] sm:$0xf]
    %v151 = vld [vmem:[%s1 + $0x1b8] sm:$0xf]
    %v152 = vld [vmem:[%s1 + $0x1bc] sm:$0xf]
    %v153 = vld [vmem:[%s1 + $0x1c0] sm:$0xf]
    %v154 = vld [vmem:[%s1 + $0x1c4] sm:$0xf]
    %v155 = vld [vmem:[%s1 + $0x1c8] sm:$0xf]
    %v156 = vld [vmem:[%s1 + $0x1cc] sm:$0xf]
    %v157 = vld [vmem:[%s1 + $0x1d0] sm:$0xf]
    %v158 = vld [vmem:[%s1 + $0x1d4] sm:$0xf]
    %v159 = vld [vmem:[%s1 + $0x1d8] sm:$0xf]
    %v160 = vld [vmem:[%s1 + $0x1dc] sm:$0xf]
    %v161 = vld [vmem:[%s1 + $0x1e0] sm:$0xf]
    %v162 = vld [vmem:[%s1 + $0x1e4] sm:$0xf]
    %v163 = vld [vmem:[%s1 + $0x1e8] sm:$0xf]
    %v164 = vld [vmem:[%s1 + $0x1ec] sm:$0xf]
    %v165 = vld [vmem:[%s1 + $0x1f0] sm:$0xf]
    %v166 = vld [vmem:[%s1 + $0x1f4] sm:$0xf]
    %v167 = vld [vmem:[%s1 + $0x1f8] sm:$0xf]
    %v168 = vld [vmem:[%s1 + $0x1fc] sm:$0xf]
    %v169 = vld [vmem:[%s2] sm:$0x1]
    %v171 = vlaneseq
    %v172 = vshrl.u32 %v171, 7
    %v173 = vsub.s32 0, %v172
    %v174 = vrot.slane %v169, %v173
    %v196 = vunpack.c.l.b16 %v21
    %v197 = vunpack.c.h.b16 %v21
    %v198 = vunpack.c.l.b16 %v22
    %v199 = vunpack.c.h.b16 %v22
    %v200 = vunpack.c.l.b16 %v23
    %v201 = vunpack.c.h.b16 %v23
    %v202 = vunpack.c.l.b16 %v24
    %v203 = vunpack.c.h.b16 %v24
    %v204 = vunpack.c.l.b16 %v25
    %v205 = vunpack.c.h.b16 %v25
    %v206 = vunpack.c.l.b16 %v26
    %v207 = vunpack.c.h.b16 %v26
    %v208 = vunpack.c.l.b16 %v27
    %v209 = vunpack.c.h.b16 %v27
    %v210 = vunpack.c.l.b16 %v28
    %v211 = vunpack.c.h.b16 %v28
    %v212 = vunpack.c.l.b16 %v29
    %v213 = vunpack.c.h.b16 %v29
    %v214 = vunpack.c.l.b16 %v30
    %v215 = vunpack.c.h.b16 %v30
    %v216 = vunpack.c.l.b16 %v31
    %v217 = vunpack.c.h.b16 %v31
    %v218 = vunpack.c.l.b16 %v32
    %v219 = vunpack.c.h.b16 %v32
    %v220 = vunpack.c.l.b16 %v33
    %v221 = vunpack.c.h.b16 %v33
    %v222 = vunpack.c.l.b16 %v34
    %v223 = vunpack.c.h.b16 %v34
    %v224 = vunpack.c.l.b16 %v35
    %v225 = vunpack.c.h.b16 %v35
    %v226 = vunpack.c.l.b16 %v36
    %v227 = vunpack.c.h.b16 %v36
    %v228 = vunpack.c.l.b16 %v37
    %v229 = vunpack.c.h.b16 %v37
    %v230 = vunpack.c.l.b16 %v38
    %v231 = vunpack.c.h.b16 %v38
    %v232 = vunpack.c.l.b16 %v39
    %v233 = vunpack.c.h.b16 %v39
    %v234 = vunpack.c.l.b16 %v40
    %v235 = vunpack.c.h.b16 %v40
    %v236 = vpack.c.b16 %v204, %v196
    %v237 = vpack.c.b16 %v205, %v197
    %v238 = vpack.c.b16 %v206, %v198
    %v239 = vpack.c.b16 %v207, %v199
    %v240 = vpack.c.b16 %v208, %v200
    %v241 = vpack.c.b16 %v209, %v201
    %v242 = vpack.c.b16 %v210, %v202
    %v243 = vpack.c.b16 %v211, %v203
    %v244 = vpack.c.b16 %v220, %v212
    %v245 = vpack.c.b16 %v221, %v213
    %v246 = vpack.c.b16 %v222, %v214
    %v247 = vpack.c.b16 %v223, %v215
    %v248 = vpack.c.b16 %v224, %v216
    %v249 = vpack.c.b16 %v225, %v217
    %v250 = vpack.c.b16 %v226, %v218
    %v251 = vpack.c.b16 %v227, %v219
    %v252 = vpack.c.b16 %v228, %v228
    %v253 = vpack.c.b16 %v229, %v229
    %v254 = vpack.c.b16 %v230, %v230
    %v255 = vpack.c.b16 %v231, %v231
    %v256 = vpack.c.b16 %v232, %v232
    %v257 = vpack.c.b16 %v233, %v233
    %v258 = vpack.c.b16 %v234, %v234
    %v259 = vpack.c.b16 %v235, %v235
    %v412 = vunpack.c.l.b16 %v41
    %v413 = vunpack.c.l.b16 %v42
    %v414 = vunpack.c.l.b16 %v43
    %v415 = vunpack.c.l.b16 %v44
    %v416 = vunpack.c.l.b16 %v45
    %v417 = vunpack.c.l.b16 %v46
    %v418 = vunpack.c.l.b16 %v47
    %v419 = vunpack.c.l.b16 %v48
    %v420 = vunpack.c.l.b16 %v49
    %v421 = vunpack.c.l.b16 %v50
    %v422 = vunpack.c.l.b16 %v51
    %v423 = vunpack.c.l.b16 %v52
    %v424 = vunpack.c.l.b16 %v53
    %v425 = vunpack.c.l.b16 %v54
    %v426 = vunpack.c.l.b16 %v55
    %v427 = vunpack.c.l.b16 %v56
    %v428 = vunpack.c.l.b16 %v57
    %v429 = vunpack.c.l.b16 %v58
    %v430 = vunpack.c.l.b16 %v59
    %v431 = vunpack.c.l.b16 %v60
    %v432 = vunpack.c.l.b16 %v61
    %v433 = vunpack.c.l.b16 %v62
    %v434 = vunpack.c.l.b16 %v63
    %v435 = vunpack.c.l.b16 %v64
    %v436 = vunpack.c.l.b16 %v65
    %v437 = vunpack.c.l.b16 %v66
    %v438 = vunpack.c.l.b16 %v67
    %v439 = vunpack.c.l.b16 %v68
    %v440 = vunpack.c.l.b16 %v69
    %v441 = vunpack.c.l.b16 %v70
    %v442 = vunpack.c.l.b16 %v71
    %v443 = vunpack.c.l.b16 %v72
    %v444 = vunpack.c.l.b16 %v73
    %v445 = vunpack.c.l.b16 %v74
    %v446 = vunpack.c.l.b16 %v75
    %v447 = vunpack.c.l.b16 %v76
    %v448 = vunpack.c.l.b16 %v77
    %v449 = vunpack.c.l.b16 %v78
    %v450 = vunpack.c.l.b16 %v79
    %v451 = vunpack.c.l.b16 %v80
    %v452 = vunpack.c.l.b16 %v81
    %v453 = vunpack.c.l.b16 %v82
    %v454 = vunpack.c.l.b16 %v83
    %v455 = vunpack.c.l.b16 %v84
    %v456 = vunpack.c.l.b16 %v85
    %v457 = vunpack.c.l.b16 %v86
    %v458 = vunpack.c.l.b16 %v87
    %v459 = vunpack.c.l.b16 %v88
    %v460 = vunpack.c.l.b16 %v89
    %v461 = vunpack.c.l.b16 %v90
    %v462 = vunpack.c.l.b16 %v91
    %v463 = vunpack.c.l.b16 %v92
    %v464 = vunpack.c.l.b16 %v93
    %v465 = vunpack.c.l.b16 %v94
    %v466 = vunpack.c.l.b16 %v95
    %v467 = vunpack.c.l.b16 %v96
    %v468 = vunpack.c.l.b16 %v97
    %v469 = vunpack.c.l.b16 %v98
    %v470 = vunpack.c.l.b16 %v99
    %v471 = vunpack.c.l.b16 %v100
    %v472 = vunpack.c.l.b16 %v101
    %v473 = vunpack.c.l.b16 %v102
    %v474 = vunpack.c.l.b16 %v103
    %v475 = vunpack.c.l.b16 %v104
    %v476 = vunpack.c.l.b16 %v105
    %v477 = vunpack.c.l.b16 %v106
    %v478 = vunpack.c.l.b16 %v107
    %v479 = vunpack.c.l.b16 %v108
    %v480 = vunpack.c.l.b16 %v109
    %v481 = vunpack.c.l.b16 %v110
    %v482 = vunpack.c.l.b16 %v111
    %v483 = vunpack.c.l.b16 %v112
    %v484 = vunpack.c.l.b16 %v113
    %v485 = vunpack.c.l.b16 %v114
    %v486 = vunpack.c.l.b16 %v115
    %v487 = vunpack.c.l.b16 %v116
    %v488 = vunpack.c.l.b16 %v117
    %v489 = vunpack.c.l.b16 %v118
    %v490 = vunpack.c.l.b16 %v119
    %v491 = vunpack.c.l.b16 %v120
    %v492 = vunpack.c.l.b16 %v121
    %v493 = vunpack.c.l.b16 %v122
    %v494 = vunpack.c.l.b16 %v123
    %v495 = vunpack.c.l.b16 %v124
    %v496 = vunpack.c.l.b16 %v125
    %v497 = vunpack.c.l.b16 %v126
    %v498 = vunpack.c.l.b16 %v127
    %v499 = vunpack.c.l.b16 %v128
    %v500 = vunpack.c.l.b16 %v129
    %v501 = vunpack.c.l.b16 %v130
    %v502 = vunpack.c.l.b16 %v131
    %v503 = vunpack.c.l.b16 %v132
    %v504 = vunpack.c.l.b16 %v133
    %v505 = vunpack.c.l.b16 %v134
    %v506 = vunpack.c.l.b16 %v135
    %v507 = vunpack.c.l.b16 %v136
    %v508 = vunpack.c.l.b16 %v137
    %v509 = vunpack.c.l.b16 %v138
    %v510 = vunpack.c.l.b16 %v139
    %v511 = vunpack.c.l.b16 %v140
    %v512 = vunpack.c.l.b16 %v141
    %v513 = vunpack.c.l.b16 %v142
    %v514 = vunpack.c.l.b16 %v143
    %v515 = vunpack.c.l.b16 %v144
    %v516 = vunpack.c.l.b16 %v145
    %v517 = vunpack.c.l.b16 %v146
    %v518 = vunpack.c.l.b16 %v147
    %v519 = vunpack.c.l.b16 %v148
    %v520 = vunpack.c.l.b16 %v149
    %v521 = vunpack.c.l.b16 %v150
    %v522 = vunpack.c.l.b16 %v151
    %v523 = vunpack.c.l.b16 %v152
    %v524 = vunpack.c.l.b16 %v153
    %v525 = vunpack.c.l.b16 %v154
    %v526 = vunpack.c.l.b16 %v155
    %v527 = vunpack.c.l.b16 %v156
    %v528 = vunpack.c.l.b16 %v157
    %v529 = vunpack.c.l.b16 %v158
    %v530 = vunpack.c.l.b16 %v159
    %v531 = vunpack.c.l.b16 %v160
    %v532 = vunpack.c.l.b16 %v161
    %v533 = vunpack.c.l.b16 %v162
    %v534 = vunpack.c.l.b16 %v163
    %v535 = vunpack.c.l.b16 %v164
    %v536 = vunpack.c.l.b16 %v165
    %v537 = vunpack.c.l.b16 %v166
    %v538 = vunpack.c.l.b16 %v167
    %v539 = vunpack.c.l.b16 %v168
    %v540 = vpack.c.b16 %v413, %v412
    %v541 = vpack.c.b16 %v415, %v414
    %v542 = vpack.c.b16 %v417, %v416
    %v543 = vpack.c.b16 %v419, %v418
    %v544 = vpack.c.b16 %v421, %v420
    %v545 = vpack.c.b16 %v423, %v422
    %v546 = vpack.c.b16 %v425, %v424
    %v547 = vpack.c.b16 %v427, %v426
    %v548 = vpack.c.b16 %v429, %v428
    %v549 = vpack.c.b16 %v431, %v430
    %v550 = vpack.c.b16 %v433, %v432
    %v551 = vpack.c.b16 %v435, %v434
    %v552 = vpack.c.b16 %v437, %v436
    %v553 = vpack.c.b16 %v439, %v438
    %v554 = vpack.c.b16 %v441, %v440
    %v555 = vpack.c.b16 %v443, %v442
    %v556 = vpack.c.b16 %v445, %v444
    %v557 = vpack.c.b16 %v447, %v446
    %v558 = vpack.c.b16 %v449, %v448
    %v559 = vpack.c.b16 %v451, %v450
    %v560 = vpack.c.b16 %v453, %v452
    %v561 = vpack.c.b16 %v455, %v454
    %v562 = vpack.c.b16 %v457, %v456
    %v563 = vpack.c.b16 %v459, %v458
    %v564 = vpack.c.b16 %v461, %v460
    %v565 = vpack.c.b16 %v463, %v462
    %v566 = vpack.c.b16 %v465, %v464
    %v567 = vpack.c.b16 %v467, %v466
    %v568 = vpack.c.b16 %v469, %v468
    %v569 = vpack.c.b16 %v471, %v470
    %v570 = vpack.c.b16 %v473, %v472
    %v571 = vpack.c.b16 %v475, %v474
    %v572 = vpack.c.b16 %v477, %v476
    %v573 = vpack.c.b16 %v479, %v478
    %v574 = vpack.c.b16 %v481, %v480
    %v575 = vpack.c.b16 %v483, %v482
    %v576 = vpack.c.b16 %v485, %v484
    %v577 = vpack.c.b16 %v487, %v486
    %v578 = vpack.c.b16 %v489, %v488
    %v579 = vpack.c.b16 %v491, %v490
    %v580 = vpack.c.b16 %v493, %v492
    %v581 = vpack.c.b16 %v495, %v494
    %v582 = vpack.c.b16 %v497, %v496
    %v583 = vpack.c.b16 %v499, %v498
    %v584 = vpack.c.b16 %v501, %v500
    %v585 = vpack.c.b16 %v503, %v502
    %v586 = vpack.c.b16 %v505, %v504
    %v587 = vpack.c.b16 %v507, %v506
    %v588 = vpack.c.b16 %v509, %v508
    %v589 = vpack.c.b16 %v511, %v510
    %v590 = vpack.c.b16 %v513, %v512
    %v591 = vpack.c.b16 %v515, %v514
    %v592 = vpack.c.b16 %v517, %v516
    %v593 = vpack.c.b16 %v519, %v518
    %v594 = vpack.c.b16 %v521, %v520
    %v595 = vpack.c.b16 %v523, %v522
    %v596 = vpack.c.b16 %v525, %v524
    %v597 = vpack.c.b16 %v527, %v526
    %v598 = vpack.c.b16 %v529, %v528
    %v599 = vpack.c.b16 %v531, %v530
    %v600 = vpack.c.b16 %v533, %v532
    %v601 = vpack.c.b16 %v535, %v534
    %v602 = vpack.c.b16 %v537, %v536
    %v603 = vpack.c.b16 %v539, %v538
    %668 = vmatprep.subr.bf16.mxu0 0
    %669 = vmatpush1.bf16.msra.mxu0 %v540
    %670 = vmatprep.subr.bf16.mxu0 0
    %671 = vmatpush1.bf16.msra.mxu0 %v541
    %672 = vmatprep.subr.bf16.mxu0 0
    %673 = vmatpush1.bf16.msra.mxu0 %v542
    %674 = vmatprep.subr.bf16.mxu0 0
    %675 = vmatpush1.bf16.msra.mxu0 %v543
    %676 = vmatprep.subr.bf16.mxu0 0
    %677 = vmatpush1.bf16.msra.mxu0 %v544
    %678 = vmatprep.subr.bf16.mxu0 0
    %679 = vmatpush1.bf16.msra.mxu0 %v545
    %680 = vmatprep.subr.bf16.mxu0 0
    %681 = vmatpush1.bf16.msra.mxu0 %v546
    %682 = vmatprep.subr.bf16.mxu0 0
    %683 = vmatpush1.bf16.msra.mxu0 %v547
    %684 = vmatprep.subr.bf16.mxu0 0
    %685 = vmatpush1.bf16.msra.mxu0 %v548
    %686 = vmatprep.subr.bf16.mxu0 0
    %687 = vmatpush1.bf16.msra.mxu0 %v549
    %688 = vmatprep.subr.bf16.mxu0 0
    %689 = vmatpush1.bf16.msra.mxu0 %v550
    %690 = vmatprep.subr.bf16.mxu0 0
    %691 = vmatpush1.bf16.msra.mxu0 %v551
    %692 = vmatprep.subr.bf16.mxu0 0
    %693 = vmatpush1.bf16.msra.mxu0 %v552
    %694 = vmatprep.subr.bf16.mxu0 0
    %695 = vmatpush1.bf16.msra.mxu0 %v553
    %696 = vmatprep.subr.bf16.mxu0 0
    %697 = vmatpush1.bf16.msra.mxu0 %v554
    %698 = vmatprep.subr.bf16.mxu0 0
    %699 = vmatpush1.bf16.msra.mxu0 %v555
    %700 = vmatprep.mubr.bf16.mxu0 %v237
    %701 = vmatmul.mubr.bf16.gmra.mrb[0].mxu0 %v236
    %v702 = vpop.f32.mrb[0].mxu0
    %v703 = vadd.f32 %v174, %v702
    %v704 = vpop.f32.mrb[0].mxu0
    %v705 = vpop.f32.mrb[0].mxu0
    %v706 = vadd.f32 %v174, %v705
    %v707 = vpop.f32.mrb[0].mxu0
    %708 = vmatprep.mubr.bf16.mxu0 %v245
    %709 = vmatmul.mubr.bf16.gmra.mrb[0].mxu0 %v244
    %v710 = vpop.f32.mrb[0].mxu0
    %v711 = vadd.f32 %v174, %v710
    %v712 = vpop.f32.mrb[0].mxu0
    %v713 = vpop.f32.mrb[0].mxu0
    %v714 = vadd.f32 %v174, %v713
    %v715 = vpop.f32.mrb[0].mxu0
    %716 = vmatprep.mubr.bf16.mxu0 %v253
    %717 = vmatmul.mubr.bf16.gmra.mrb[0].mxu0 %v252
    %v718 = vpop.f32.mrb[0].mxu0
    %v719 = vadd.f32 %v174, %v718
    %v720 = vpop.f32.mrb[0].mxu0
    %v721 = vpop.f32.mrb[0].mxu0
    %v722 = vpop.f32.mrb[0].mxu0
    %723 = vdwg.mxu0
    %724 = vmatprep.subr.bf16.mxu0 0
    %725 = vmatpush1.bf16.msra.mxu0 %v556
    %726 = vmatprep.subr.bf16.mxu0 0
    %727 = vmatpush1.bf16.msra.mxu0 %v557
    %728 = vmatprep.subr.bf16.mxu0 0
    %729 = vmatpush1.bf16.msra.mxu0 %v558
    %730 = vmatprep.subr.bf16.mxu0 0
    %731 = vmatpush1.bf16.msra.mxu0 %v559
    %732 = vmatprep.subr.bf16.mxu0 0
    %733 = vmatpush1.bf16.msra.mxu0 %v560
    %734 = vmatprep.subr.bf16.mxu0 0
    %735 = vmatpush1.bf16.msra.mxu0 %v561
    %736 = vmatprep.subr.bf16.mxu0 0
    %737 = vmatpush1.bf16.msra.mxu0 %v562
    %738 = vmatprep.subr.bf16.mxu0 0
    %739 = vmatpush1.bf16.msra.mxu0 %v563
    %740 = vmatprep.subr.bf16.mxu0 0
    %741 = vmatpush1.bf16.msra.mxu0 %v564
    %742 = vmatprep.subr.bf16.mxu0 0
    %743 = vmatpush1.bf16.msra.mxu0 %v565
    %744 = vmatprep.subr.bf16.mxu0 0
    %745 = vmatpush1.bf16.msra.mxu0 %v566
    %746 = vmatprep.subr.bf16.mxu0 0
    %747 = vmatpush1.bf16.msra.mxu0 %v567
    %748 = vmatprep.subr.bf16.mxu0 0
    %749 = vmatpush1.bf16.msra.mxu0 %v568
    %750 = vmatprep.subr.bf16.mxu0 0
    %751 = vmatpush1.bf16.msra.mxu0 %v569
    %752 = vmatprep.subr.bf16.mxu0 0
    %753 = vmatpush1.bf16.msra.mxu0 %v570
    %754 = vmatprep.subr.bf16.mxu0 0
    %755 = vmatpush1.bf16.msra.mxu0 %v571
    %756 = vmatprep.mubr.bf16.mxu0 %v239
    %757 = vmatmul.mubr.bf16.gmra.mrb[0].mxu0 %v238
    %v758 = vpop.f32.mrb[0].mxu0
    %v759 = vadd.f32 %v703, %v758
    %v760 = vpop.f32.mrb[0].mxu0
    %v761 = vpop.f32.mrb[0].mxu0
    %v762 = vadd.f32 %v706, %v761
    %v763 = vpop.f32.mrb[0].mxu0
    %764 = vmatprep.mubr.bf16.mxu0 %v247
    %765 = vmatmul.mubr.bf16.gmra.mrb[0].mxu0 %v246
    %v766 = vpop.f32.mrb[0].mxu0
    %v767 = vadd.f32 %v711, %v766
    %v768 = vpop.f32.mrb[0].mxu0
    %v769 = vpop.f32.mrb[0].mxu0
    %v770 = vadd.f32 %v714, %v769
    %v771 = vpop.f32.mrb[0].mxu0
    %772 = vmatprep.mubr.bf16.mxu0 %v255
    %773 = vmatmul.mubr.bf16.gmra.mrb[0].mxu0 %v254
    %v774 = vpop.f32.mrb[0].mxu0
    %v775 = vadd.f32 %v719, %v774
    %v776 = vpop.f32.mrb[0].mxu0
    %v777 = vpop.f32.mrb[0].mxu0
    %v778 = vpop.f32.mrb[0].mxu0
    %779 = vdwg.mxu0
    %780 = vmatprep.subr.bf16.mxu0 0
    %781 = vmatpush1.bf16.msra.mxu0 %v572
    %782 = vmatprep.subr.bf16.mxu0 0
    %783 = vmatpush1.bf16.msra.mxu0 %v573
    %784 = vmatprep.subr.bf16.mxu0 0
    %785 = vmatpush1.bf16.msra.mxu0 %v574
    %786 = vmatprep.subr.bf16.mxu0 0
    %787 = vmatpush1.bf16.msra.mxu0 %v575
    %788 = vmatprep.subr.bf16.mxu0 0
    %789 = vmatpush1.bf16.msra.mxu0 %v576
    %790 = vmatprep.subr.bf16.mxu0 0
    %791 = vmatpush1.bf16.msra.mxu0 %v577
    %792 = vmatprep.subr.bf16.mxu0 0
    %793 = vmatpush1.bf16.msra.mxu0 %v578
    %794 = vmatprep.subr.bf16.mxu0 0
    %795 = vmatpush1.bf16.msra.mxu0 %v579
    %796 = vmatprep.subr.bf16.mxu0 0
    %797 = vmatpush1.bf16.msra.mxu0 %v580
    %798 = vmatprep.subr.bf16.mxu0 0
    %799 = vmatpush1.bf16.msra.mxu0 %v581
    %800 = vmatprep.subr.bf16.mxu0 0
    %801 = vmatpush1.bf16.msra.mxu0 %v582
    %802 = vmatprep.subr.bf16.mxu0 0
    %803 = vmatpush1.bf16.msra.mxu0 %v583
    %804 = vmatprep.subr.bf16.mxu0 0
    %805 = vmatpush1.bf16.msra.mxu0 %v584
    %806 = vmatprep.subr.bf16.mxu0 0
    %807 = vmatpush1.bf16.msra.mxu0 %v585
    %808 = vmatprep.subr.bf16.mxu0 0
    %809 = vmatpush1.bf16.msra.mxu0 %v586
    %810 = vmatprep.subr.bf16.mxu0 0
    %811 = vmatpush1.bf16.msra.mxu0 %v587
    %812 = vmatprep.mubr.bf16.mxu0 %v241
    %813 = vmatmul.mubr.bf16.gmra.mrb[0].mxu0 %v240
    %v814 = vpop.f32.mrb[0].mxu0
    %v815 = vadd.f32 %v759, %v814
    %v816 = vpop.f32.mrb[0].mxu0
    %v817 = vpop.f32.mrb[0].mxu0
    %v818 = vadd.f32 %v762, %v817
    %v819 = vpop.f32.mrb[0].mxu0
    %820 = vmatprep.mubr.bf16.mxu0 %v249
    %821 = vmatmul.mubr.bf16.gmra.mrb[0].mxu0 %v248
    %v822 = vpop.f32.mrb[0].mxu0
    %v823 = vadd.f32 %v767, %v822
    %v824 = vpop.f32.mrb[0].mxu0
    %v825 = vpop.f32.mrb[0].mxu0
    %v826 = vadd.f32 %v770, %v825
    %v827 = vpop.f32.mrb[0].mxu0
    %828 = vmatprep.mubr.bf16.mxu0 %v257
    %829 = vmatmul.mubr.bf16.gmra.mrb[0].mxu0 %v256
    %v830 = vpop.f32.mrb[0].mxu0
    %v831 = vadd.f32 %v775, %v830
    %v832 = vpop.f32.mrb[0].mxu0
    %v833 = vpop.f32.mrb[0].mxu0
    %v834 = vpop.f32.mrb[0].mxu0
    %835 = vdwg.mxu0
    %836 = vmatprep.subr.bf16.mxu0 0
    %837 = vmatpush1.bf16.msra.mxu0 %v588
    %838 = vmatprep.subr.bf16.mxu0 0
    %839 = vmatpush1.bf16.msra.mxu0 %v589
    %840 = vmatprep.subr.bf16.mxu0 0
    %841 = vmatpush1.bf16.msra.mxu0 %v590
    %842 = vmatprep.subr.bf16.mxu0 0
    %843 = vmatpush1.bf16.msra.mxu0 %v591
    %844 = vmatprep.subr.bf16.mxu0 0
    %845 = vmatpush1.bf16.msra.mxu0 %v592
    %846 = vmatprep.subr.bf16.mxu0 0
    %847 = vmatpush1.bf16.msra.mxu0 %v593
    %848 = vmatprep.subr.bf16.mxu0 0
    %849 = vmatpush1.bf16.msra.mxu0 %v594
    %850 = vmatprep.subr.bf16.mxu0 0
    %851 = vmatpush1.bf16.msra.mxu0 %v595
    %852 = vmatprep.subr.bf16.mxu0 0
    %853 = vmatpush1.bf16.msra.mxu0 %v596
    %854 = vmatprep.subr.bf16.mxu0 0
    %855 = vmatpush1.bf16.msra.mxu0 %v597
    %856 = vmatprep.subr.bf16.mxu0 0
    %857 = vmatpush1.bf16.msra.mxu0 %v598
    %858 = vmatprep.subr.bf16.mxu0 0
    %859 = vmatpush1.bf16.msra.mxu0 %v599
    %860 = vmatprep.subr.bf16.mxu0 0
    %861 = vmatpush1.bf16.msra.mxu0 %v600
    %862 = vmatprep.subr.bf16.mxu0 0
    %863 = vmatpush1.bf16.msra.mxu0 %v601
    %864 = vmatprep.subr.bf16.mxu0 0
    %865 = vmatpush1.bf16.msra.mxu0 %v602
    %866 = vmatprep.subr.bf16.mxu0 0
    %867 = vmatpush1.bf16.msra.mxu0 %v603
    %868 = vmatprep.mubr.bf16.mxu0 %v243
    %869 = vmatmul.mubr.bf16.gmra.mrb[0].mxu0 %v242
    %v870 = vpop.f32.mrb[0].mxu0
    %v871 = vadd.f32 %v815, %v870
    %v872 = vpop.f32.mrb[0].mxu0
    %v873 = vpop.f32.mrb[0].mxu0
    %v874 = vadd.f32 %v818, %v873
    %v875 = vpop.f32.mrb[0].mxu0
    %876 = vmatprep.mubr.bf16.mxu0 %v251
    %877 = vmatmul.mubr.bf16.gmra.mrb[0].mxu0 %v250
    %v878 = vpop.f32.mrb[0].mxu0
    %v879 = vadd.f32 %v823, %v878
    %v880 = vpop.f32.mrb[0].mxu0
    %v881 = vpop.f32.mrb[0].mxu0
    %v882 = vadd.f32 %v826, %v881
    %v883 = vpop.f32.mrb[0].mxu0
    %884 = vmatprep.mubr.bf16.mxu0 %v259
    %885 = vmatmul.mubr.bf16.gmra.mrb[0].mxu0 %v258
    %v886 = vpop.f32.mrb[0].mxu0
    %v887 = vadd.f32 %v831, %v886
    %v888 = vpop.f32.mrb[0].mxu0
    %v889 = vpop.f32.mrb[0].mxu0
    %v890 = vpop.f32.mrb[0].mxu0
    %891 = vdwg.mxu0
    %v892 = vlaneseq
    %v893 = vshrl.u32 %v892, 7
    %v894 = vadd.s32 %v893, 8
    %v895 = vadd.s32 %v893, 16
    %v896 = vadd.s32 %v893, 24
    %v897 = vadd.s32 %v893, 32
    %s898 = smul.u32 0, 40
    %v899 = vstv %s898
    %v900 = vadd.s32 %v893, %v899
    %v901 = vadd.s32 %v894, %v899
    %v902 = vadd.s32 %v895, %v899
    %v903 = vadd.s32 %v896, %v899
    %v904 = vadd.s32 %v897, %v899
    %vm905 = vcmp.lt.s32.totalorder %v900, 36
    %vm906 = vcmp.lt.s32.totalorder %v901, 36
    %vm907 = vcmp.lt.s32.totalorder %v902, 36
    %vm908 = vcmp.lt.s32.totalorder %v903, 36
    %vm909 = vcmp.lt.s32.totalorder %v904, 36
    %vm910 = vcmp.lt.s32.totalorder %v900, 18
    %vm911 = vcmp.lt.s32.totalorder %v901, 18
    %vm912 = vcmp.lt.s32.totalorder %v902, 18
    %vm913 = vcmp.lt.s32.totalorder %v903, 18
    %vm914 = vcmp.lt.s32.totalorder %v904, 18
    %v915 = vsub.f32 1.0, %v871
    %v916 = vsub.f32 1.0, %v874
    %v917 = vsub.f32 1.0, %v879
    %v918 = vsub.f32 1.0, %v882
    %v919 = vsub.f32 1.0, %v887
    %v920 = vmax.f32 %v915, 0.0
    %v921 = vmax.f32 %v916, 0.0
    %v922 = vmax.f32 %v917, 0.0
    %v923 = vmax.f32 %v918, 0.0
    %v924 = vmax.f32 %v919, 0.0
    %v925 = vmul.f32 %v920, 0.055555556
    %v926 = vmul.f32 %v921, 0.055555556
    %v927 = vmul.f32 %v922, 0.055555556
    %v928 = vmul.f32 %v923, 0.055555556
    %v929 = vmul.f32 %v924, 0.055555556
    %v930 = vadd.f32 %v871, 1.0
    %v931 = vadd.f32 %v874, 1.0
    %v932 = vadd.f32 %v879, 1.0
    %v933 = vadd.f32 %v882, 1.0
    %v934 = vadd.f32 %v887, 1.0
    %v935 = vmax.f32 %v930, 0.0
    %v936 = vmax.f32 %v931, 0.0
    %v937 = vmax.f32 %v932, 0.0
    %v938 = vmax.f32 %v933, 0.0
    %v939 = vmax.f32 %v934, 0.0
    %v940 = vmul.f32 %v935, 0.055555556
    %v941 = vmul.f32 %v936, 0.055555556
    %v942 = vmul.f32 %v937, 0.055555556
    %v943 = vmul.f32 %v938, 0.055555556
    %v944 = vmul.f32 %v939, 0.055555556
    %v945 = vsel %vm910, %v925, %v940
    %v946 = vsel %vm911, %v926, %v941
    %v947 = vsel %vm912, %v927, %v942
    %v948 = vsel %vm913, %v928, %v943
    %v949 = vsel %vm914, %v929, %v944
    %v950 = vsel %vm905, %v945, 0.0
    %v951 = vsel %vm906, %v946, 0.0
    %v952 = vsel %vm907, %v947, 0.0
    %v953 = vsel %vm908, %v948, 0.0
    %v954 = vsel %vm909, %v949, 0.0
    %v955 = vld [vmem:[#allocation2] sm:$0x1]
    %v956 = vadd.f32 %v950, %v951
    %v957 = vadd.f32 %v956, %v952
    %v958 = vadd.f32 %v957, %v953
    %v959 = vadd.f32 %v958, %v954
    %v960 = vrot.slane %v959, 4
    %v961 = vadd.f32 %v959, %v960
    %v962 = vrot.slane %v961, 2
    %v963 = vadd.f32 %v961, %v962
    %v964 = vrot.slane %v963, 1
    %v965 = vadd.f32 %v963, %v964
    %v966 = vadd.f32 %v955, %v965
    %967 = vst [vmem:[#allocation2] sm:$0x1] %v966
    // Predicated region
    $region18: #{_lambda_.11} parent=1 // pred_check
      _
    $region19: #{_lambda_.11} parent=1 // pred_check_branch
      %969 = sbr.rel (0) target = $region21
    $region20: #{_lambda_.11} parent=1 // pred_region
      %s971 = ssub.s32 16, 16
      %972 = vsyncadd [#allocation3], %s971
      %s974 = sshll.u32 [#allocation2], 4
      %s975 = int_to_ptr.vmem [resolvable:$true] %s974
      %977 = dma.vmem_to_hbm [thread:$0]  %s975, 16, %s3, [#allocation3]
    $region21: #{_lambda_.11} parent=1 // pred_fallthru
      _
    // Predicated region
    $region22: #{_lambda_.11} parent=1 // pred_check
      _
    $region23: #{_lambda_.11} parent=1 // pred_check_branch
      %979 = sbr.rel (0) target = $region25
    $region24: #{_lambda_.11} parent=1 // pred_region
      %980 = dma.done [#allocation3], 16
    $region25: #{_lambda_.11} parent=1 // pred_fallthru
      _
    %981 = vsyncpa [#allocation3], 1

</llo_original>
